<compile_context>
chip_gen: v5e
topology: v5e:2x2
jax: 0.10.0
libtpu: 0.0.40
codegen_flags: <defaults>
</compile_context>

<pallas_src>
import functools

import jax
import jax.numpy as jnp
from jax.experimental import pallas as pl
from jax.experimental.pallas import tpu as pltpu  # noqa: F401  (TPU backend)

CFG = dict(
    vocab_size=256,
    context_length=16,
    emb_dim=32,
    n_heads=4,
    n_layers=2,
    drop_rate=0.0,   # dropout is identity (matches eval / rate-0 semantics)
    qkv_bias=False,
)


# ---------------------------------------------------------------- helpers ---
def _layernorm(x, scale, shift, eps=1e-5):
    mean = jnp.mean(x, axis=-1, keepdims=True)
    xc = x - mean
    var = jnp.mean(xc * xc, axis=-1, keepdims=True)        # unbiased=False
    return scale * (xc * jax.lax.rsqrt(var + eps)) + shift


def _gelu_tanh(x):
    c = jnp.float32(0.7978845608028654)                    # sqrt(2/pi)
    return 0.5 * x * (1.0 + jnp.tanh(c * (x + 0.044715 * (x * x * x))))


# ----------------------------------------------------------------- kernel ---
def _gpt_kernel(B, T, D, H, L,
                tok_ref, pos_ref,
                ln1s_ref, ln1b_ref, wq_ref, wk_ref, wv_ref, wo_ref, bo_ref,
                ln2s_ref, ln2b_ref, w1_ref, b1_ref, w2_ref, b2_ref,
                fs_ref, fb_ref, wout_ref,
                o_ref):
    """Fused GPT forward. tok: (B,T,D); output logits: (B*T, V)."""
    BT = B * T
    hd = D // H
    inv_sqrt_hd = jnp.float32(1.0 / (hd ** 0.5))

    # Embedding add (drop_emb = identity); keep activations as (B*T, D).
    x = (tok_ref[...] + pos_ref[...][None]).reshape(BT, D)

    # Causal mask computed ONCE and reused for every layer / head.
    row = jax.lax.broadcasted_iota(jnp.int32, (T, T), 0)
    col = jax.lax.broadcasted_iota(jnp.int32, (T, T), 1)
    causal = (col <= row)[None, :, :]                      # (1, T, T)

    for l in range(L):                                     # static unroll
        # ------------------ attention sublayer ------------------
        xn = _layernorm(x, ln1s_ref[l], ln1b_ref[l])
        # fold 1/sqrt(hd) into q (single (BT,D) multiply per layer)
        q = jnp.dot(xn, wq_ref[l],
                    preferred_element_type=jnp.float32) * inv_sqrt_hd
        k = jnp.dot(xn, wk_ref[l], preferred_element_type=jnp.float32)
        v = jnp.dot(xn, wv_ref[l], preferred_element_type=jnp.float32)
        wo = wo_ref[l]                                     # (D, D)

        attn = jnp.zeros((BT, D), jnp.float32)
        for h in range(H):                                 # static unroll
            sl = slice(h * hd, (h + 1) * hd)
            # leading-dim-only reshapes (lane dim untouched) -> layout-safe
            qh = q[:, sl].reshape(B, T, hd)
            kh = k[:, sl].reshape(B, T, hd)
            vh = v[:, sl].reshape(B, T, hd)
            # batched over B, contraction on last dim (no explicit k.T)
            s = jnp.einsum('bqd,bkd->bqk', qh, kh,
                           preferred_element_type=jnp.float32)
            s = jnp.where(causal, s, jnp.float32(-1e30))
            s = s - jnp.max(s, axis=-1, keepdims=True)
            p = jnp.exp(s)
            p = p * pl.reciprocal(jnp.sum(p, axis=-1, keepdims=True),
                                  approx=True)
            ctx = jnp.einsum('bqk,bkd->bqd', p, vh,
                             preferred_element_type=jnp.float32)
            # merge heads by accumulating through out-proj rows (no concat)
            attn = attn + jnp.dot(ctx.reshape(BT, hd), wo[sl, :],
                                  preferred_element_type=jnp.float32)
        x = x + attn + bo_ref[l]                           # residual (+bias)

        # ------------------ feed-forward sublayer ------------------
        xn2 = _layernorm(x, ln2s_ref[l], ln2b_ref[l])
        h1 = jnp.dot(xn2, w1_ref[l],
                     preferred_element_type=jnp.float32) + b1_ref[l]
        h1 = _gelu_tanh(h1)
        ff = jnp.dot(h1, w2_ref[l],
                     preferred_element_type=jnp.float32) + b2_ref[l]
        x = x + ff                                         # residual

    # --------- final LayerNorm + vocab projection (lane-dense V=256) --------
    xn = _layernorm(x, fs_ref[...], fb_ref[...])
    o_ref[...] = jnp.dot(xn, wout_ref[...], preferred_element_type=jnp.float32)


# ---------------------------------------------------------------- wrapper ---
def gpt_forward(params, in_idx, cfg):
    B, T = in_idx.shape
    D, H = cfg["emb_dim"], cfg["n_heads"]
    L, V = cfg["n_layers"], cfg["vocab_size"]

    tok = jnp.take(params["tok_emb"], in_idx, axis=0)      # (B, T, D) gather
    pos = params["pos_emb"][:T]                            # (T, D)

    kernel = functools.partial(_gpt_kernel, B, T, D, H, L)
    # TODO(synk): if scaled to real GPT-2 dims, tile w_out over V with a grid
    # (lane-dense blocks) and set vmem_limit_bytes; here everything (<1 MiB)
    # fits in VMEM untiled on v5e/v6e/v7x, so a single fused call is optimal.
    logits2d = pl.pallas_call(
        kernel,
        out_shape=jax.ShapeDtypeStruct((B * T, V), jnp.float32),
    )(tok, pos,
      params["ln1_scale"], params["ln1_shift"],
      params["wq"], params["wk"], params["wv"], params["wo"], params["bo"],
      params["ln2_scale"], params["ln2_shift"],
      params["w1"], params["b1"], params["w2"], params["b2"],
      params["final_scale"], params["final_shift"], params["w_out"])
    return logits2d.reshape(B, T, V)


# ------------------------------------------------------------------- init ---
def init_params(key, cfg):
    D, V = cfg["emb_dim"], cfg["vocab_size"]
    C, L = cfg["context_length"], cfg["n_layers"]

    def normal(k, shape, std=0.02):
        return (std * jax.random.normal(k, shape)).astype(jnp.float32)

    k_tok, k_pos, k_out, k_q, k_k, k_v, k_o, k_1, k_2 = jax.random.split(key, 9)

    return {
        "tok_emb": normal(k_tok, (V, D)),
        "pos_emb": normal(k_pos, (C, D)),
        # per-layer params stacked along a leading L axis
        "ln1_scale": jnp.ones((L, 1, D), jnp.float32),
        "ln1_shift": jnp.zeros((L, 1, D), jnp.float32),
        "wq": normal(k_q, (L, D, D)),
        "wk": normal(k_k, (L, D, D)),
        "wv": normal(k_v, (L, D, D)),
        "wo": normal(k_o, (L, D, D)),
        "bo": jnp.zeros((L, 1, D), jnp.float32),
        "ln2_scale": jnp.ones((L, 1, D), jnp.float32),
        "ln2_shift": jnp.zeros((L, 1, D), jnp.float32),
        "w1": normal(k_1, (L, D, 4 * D)),
        "b1": jnp.zeros((L, 1, 4 * D), jnp.float32),
        "w2": normal(k_2, (L, 4 * D, D)),
        "b2": jnp.zeros((L, 1, D), jnp.float32),
        "final_scale": jnp.ones((1, D), jnp.float32),
        "final_shift": jnp.zeros((1, D), jnp.float32),
        "w_out": normal(k_out, (D, V)),
    }


# ------------------------------------------------------------------- main ---
if __name__ == "__main__":
    key = jax.random.PRNGKey(0)
    pkey, dkey = jax.random.split(key)
    params = init_params(pkey, CFG)

    B, T = 2, 8
    in_idx = jax.random.randint(dkey, (B, T), 0, CFG["vocab_size"],
                                dtype=jnp.int32)

    fwd = jax.jit(functools.partial(gpt_forward, cfg=CFG))
    logits = jax.block_until_ready(fwd(params, in_idx))

    assert logits.shape == (B, T, CFG["vocab_size"])
    assert logits.dtype == jnp.float32
    assert bool(jnp.all(jnp.isfinite(logits)))
    print("KERNEL_OK")
</pallas_src>

<mosaic_0001>
module attributes {stable_mosaic.version = 11 : i64} {
  func.func @_gpt_kernel(%arg0: memref<2x8x32xf32, #tpu.memory_space<vmem>>, %arg1: memref<8x32xf32, #tpu.memory_space<vmem>>, %arg2: memref<2x1x32xf32, #tpu.memory_space<vmem>>, %arg3: memref<2x1x32xf32, #tpu.memory_space<vmem>>, %arg4: memref<2x32x32xf32, #tpu.memory_space<vmem>>, %arg5: memref<2x32x32xf32, #tpu.memory_space<vmem>>, %arg6: memref<2x32x32xf32, #tpu.memory_space<vmem>>, %arg7: memref<2x32x32xf32, #tpu.memory_space<vmem>>, %arg8: memref<2x1x32xf32, #tpu.memory_space<vmem>>, %arg9: memref<2x1x32xf32, #tpu.memory_space<vmem>>, %arg10: memref<2x1x32xf32, #tpu.memory_space<vmem>>, %arg11: memref<2x32x128xf32, #tpu.memory_space<vmem>>, %arg12: memref<2x1x128xf32, #tpu.memory_space<vmem>>, %arg13: memref<2x128x32xf32, #tpu.memory_space<vmem>>, %arg14: memref<2x1x32xf32, #tpu.memory_space<vmem>>, %arg15: memref<1x32xf32, #tpu.memory_space<vmem>>, %arg16: memref<1x32xf32, #tpu.memory_space<vmem>>, %arg17: memref<32x256xf32, #tpu.memory_space<vmem>>, %arg18: memref<16x256xf32, #tpu.memory_space<vmem>>) attributes {dimension_semantics = [], scalar_prefetch = 0 : i64, scratch_operands = 0 : i64, tpu.core_type = #tpu.core_type<tc>} {
    %c0 = arith.constant 0 : index
    %c0_0 = arith.constant 0 : index
    %c0_1 = arith.constant 0 : index
    %0 = vector.load %arg0[%c0, %c0_0, %c0_1] : memref<2x8x32xf32, #tpu.memory_space<vmem>>, vector<2x8x32xf32>
    %c0_2 = arith.constant 0 : index
    %c0_3 = arith.constant 0 : index
    %1 = vector.load %arg1[%c0_2, %c0_3] : memref<8x32xf32, #tpu.memory_space<vmem>>, vector<8x32xf32>
    %2 = vector.shape_cast %1 : vector<8x32xf32> to vector<1x8x32xf32>
    %3 = vector.broadcast %2 : vector<1x8x32xf32> to vector<2x8x32xf32>
    %4 = arith.addf %0, %3 : vector<2x8x32xf32>
    %5 = vector.shape_cast %4 : vector<2x8x32xf32> to vector<16x32xf32>
    %6 = tpu.iota {dimensions = array<i32: 0>} : vector<8x8xi32>
    %7 = tpu.iota {dimensions = array<i32: 1>} : vector<8x8xi32>
    %8 = arith.cmpi sle, %7, %6 : vector<8x8xi32>
    %9 = vector.shape_cast %8 : vector<8x8xi1> to vector<1x8x8xi1>
    %c0_4 = arith.constant 0 : index
    %c0_5 = arith.constant 0 : index
    %c0_6 = arith.constant 0 : index
    %10 = vector.load %arg2[%c0_4, %c0_5, %c0_6] : memref<2x1x32xf32, #tpu.memory_space<vmem>>, vector<1x1x32xf32>
    %11 = vector.shape_cast %10 : vector<1x1x32xf32> to vector<1x32xf32>
    %c0_7 = arith.constant 0 : index
    %c0_8 = arith.constant 0 : index
    %c0_9 = arith.constant 0 : index
    %12 = vector.load %arg3[%c0_7, %c0_8, %c0_9] : memref<2x1x32xf32, #tpu.memory_space<vmem>>, vector<1x1x32xf32>
    %13 = vector.shape_cast %12 : vector<1x1x32xf32> to vector<1x32xf32>
    %cst = arith.constant dense<0.000000e+00> : vector<16xf32>
    %14 = vector.multi_reduction <add>, %5, %cst [1] : vector<16x32xf32> to vector<16xf32>
    %15 = vector.shape_cast %14 : vector<16xf32> to vector<16x1xf32>
    %cst_10 = arith.constant 3.200000e+01 : f32
    %16 = vector.broadcast %cst_10 : f32 to vector<16x1xf32>
    %17 = arith.divf %15, %16 : vector<16x1xf32>
    %18 = vector.broadcast %17 : vector<16x1xf32> to vector<16x32xf32>
    %19 = arith.subf %5, %18 : vector<16x32xf32>
    %20 = arith.mulf %19, %19 : vector<16x32xf32>
    %cst_11 = arith.constant dense<0.000000e+00> : vector<16xf32>
    %21 = vector.multi_reduction <add>, %20, %cst_11 [1] : vector<16x32xf32> to vector<16xf32>
    %22 = vector.shape_cast %21 : vector<16xf32> to vector<16x1xf32>
    %cst_12 = arith.constant 3.200000e+01 : f32
    %23 = vector.broadcast %cst_12 : f32 to vector<16x1xf32>
    %24 = arith.divf %22, %23 : vector<16x1xf32>
    %cst_13 = arith.constant 9.99999974E-6 : f32
    %25 = vector.broadcast %cst_13 : f32 to vector<16x1xf32>
    %26 = arith.addf %24, %25 : vector<16x1xf32>
    %27 = math.rsqrt %26 : vector<16x1xf32>
    %28 = vector.broadcast %27 : vector<16x1xf32> to vector<16x32xf32>
    %29 = arith.mulf %19, %28 : vector<16x32xf32>
    %30 = vector.broadcast %11 : vector<1x32xf32> to vector<16x32xf32>
    %31 = arith.mulf %30, %29 : vector<16x32xf32>
    %32 = vector.broadcast %13 : vector<1x32xf32> to vector<16x32xf32>
    %33 = arith.addf %31, %32 : vector<16x32xf32>
    %c0_14 = arith.constant 0 : index
    %c0_15 = arith.constant 0 : index
    %c0_16 = arith.constant 0 : index
    %34 = vector.load %arg4[%c0_14, %c0_15, %c0_16] : memref<2x32x32xf32, #tpu.memory_space<vmem>>, vector<1x32x32xf32>
    %35 = vector.shape_cast %34 : vector<1x32x32xf32> to vector<32x32xf32>
    %cst_17 = arith.constant dense<0.000000e+00> : vector<16x32xf32>
    %36 = tpu.matmul %33, %35, %cst_17 {dimension_numbers = #tpu.dot_dimension_numbers<[1], [0], [0], [1], [0, 0, 1, 1], [], []>} : vector<16x32xf32>, vector<32x32xf32>, vector<16x32xf32> -> vector<16x32xf32>
    %cst_18 = arith.constant 0.353553385 : f32
    %37 = vector.broadcast %cst_18 : f32 to vector<16x32xf32>
    %38 = arith.mulf %36, %37 : vector<16x32xf32>
    %c0_19 = arith.constant 0 : index
    %c0_20 = arith.constant 0 : index
    %c0_21 = arith.constant 0 : index
    %39 = vector.load %arg5[%c0_19, %c0_20, %c0_21] : memref<2x32x32xf32, #tpu.memory_space<vmem>>, vector<1x32x32xf32>
    %40 = vector.shape_cast %39 : vector<1x32x32xf32> to vector<32x32xf32>
    %cst_22 = arith.constant dense<0.000000e+00> : vector<16x32xf32>
    %41 = tpu.matmul %33, %40, %cst_22 {dimension_numbers = #tpu.dot_dimension_numbers<[1], [0], [0], [1], [0, 0, 1, 1], [], []>} : vector<16x32xf32>, vector<32x32xf32>, vector<16x32xf32> -> vector<16x32xf32>
    %c0_23 = arith.constant 0 : index
    %c0_24 = arith.constant 0 : index
    %c0_25 = arith.constant 0 : index
    %42 = vector.load %arg6[%c0_23, %c0_24, %c0_25] : memref<2x32x32xf32, #tpu.memory_space<vmem>>, vector<1x32x32xf32>
    %43 = vector.shape_cast %42 : vector<1x32x32xf32> to vector<32x32xf32>
    %cst_26 = arith.constant dense<0.000000e+00> : vector<16x32xf32>
    %44 = tpu.matmul %33, %43, %cst_26 {dimension_numbers = #tpu.dot_dimension_numbers<[1], [0], [0], [1], [0, 0, 1, 1], [], []>} : vector<16x32xf32>, vector<32x32xf32>, vector<16x32xf32> -> vector<16x32xf32>
    %c0_27 = arith.constant 0 : index
    %c0_28 = arith.constant 0 : index
    %c0_29 = arith.constant 0 : index
    %45 = vector.load %arg7[%c0_27, %c0_28, %c0_29] : memref<2x32x32xf32, #tpu.memory_space<vmem>>, vector<1x32x32xf32>
    %46 = vector.shape_cast %45 : vector<1x32x32xf32> to vector<32x32xf32>
    %cst_30 = arith.constant 0.000000e+00 : f32
    %47 = vector.broadcast %cst_30 : f32 to vector<16x32xf32>
    %48 = vector.extract_strided_slice %38 {offsets = [0, 0], sizes = [16, 8], strides = [1, 1]} : vector<16x32xf32> to vector<16x8xf32>
    %49 = vector.shape_cast %48 : vector<16x8xf32> to vector<2x8x8xf32>
    %50 = vector.extract_strided_slice %41 {offsets = [0, 0], sizes = [16, 8], strides = [1, 1]} : vector<16x32xf32> to vector<16x8xf32>
    %51 = vector.shape_cast %50 : vector<16x8xf32> to vector<2x8x8xf32>
    %52 = vector.extract_strided_slice %44 {offsets = [0, 0], sizes = [16, 8], strides = [1, 1]} : vector<16x32xf32> to vector<16x8xf32>
    %53 = vector.shape_cast %52 : vector<16x8xf32> to vector<2x8x8xf32>
    "tpu.trace_start"() <{level = 10 : i32, message = "bqd,bkd->bqk"}> : () -> ()
    %cst_31 = arith.constant dense<0.000000e+00> : vector<2x8x8xf32>
    %54 = tpu.matmul %49, %51, %cst_31 {dimension_numbers = #tpu.dot_dimension_numbers<[2], [2], [1], [1], [0, 0, 0, 1, 1, 1], [0], [0]>} : vector<2x8x8xf32>, vector<2x8x8xf32>, vector<2x8x8xf32> -> vector<2x8x8xf32>
    %cst_32 = arith.constant -1.000000e+30 : f32
    "tpu.trace_stop"() : () -> ()
    %55 = vector.shape_cast %9 : vector<1x8x8xi1> to vector<1x8x8xi1>
    %56 = vector.broadcast %55 : vector<1x8x8xi1> to vector<2x8x8xi1>
    %57 = vector.broadcast %cst_32 : f32 to vector<2x8x8xf32>
    %58 = arith.select %56, %54, %57 : vector<2x8x8xi1>, vector<2x8x8xf32>
    %cst_33 = arith.constant dense<0xFF800000> : vector<2x8xf32>
    %59 = vector.multi_reduction <maximumf>, %58, %cst_33 [2] : vector<2x8x8xf32> to vector<2x8xf32>
    %60 = vector.shape_cast %59 : vector<2x8xf32> to vector<2x8x1xf32>
    %61 = vector.broadcast %60 : vector<2x8x1xf32> to vector<2x8x8xf32>
    %62 = arith.subf %58, %61 : vector<2x8x8xf32>
    %63 = math.exp %62 : vector<2x8x8xf32>
    %cst_34 = arith.constant dense<0.000000e+00> : vector<2x8xf32>
    %64 = vector.multi_reduction <add>, %63, %cst_34 [2] : vector<2x8x8xf32> to vector<2x8xf32>
    %65 = vector.shape_cast %64 : vector<2x8xf32> to vector<2x8x1xf32>
    %66 = tpu.reciprocal %65 {approx = true} : vector<2x8x1xf32> -> vector<2x8x1xf32>
    %67 = vector.broadcast %66 : vector<2x8x1xf32> to vector<2x8x8xf32>
    %68 = arith.mulf %63, %67 : vector<2x8x8xf32>
    "tpu.trace_start"() <{level = 10 : i32, message = "bqk,bkd->bqd"}> : () -> ()
    %cst_35 = arith.constant dense<0.000000e+00> : vector<2x8x8xf32>
    %69 = tpu.matmul %68, %53, %cst_35 {dimension_numbers = #tpu.dot_dimension_numbers<[2], [1], [1], [2], [0, 0, 0, 1, 1, 2], [0], [0]>} : vector<2x8x8xf32>, vector<2x8x8xf32>, vector<2x8x8xf32> -> vector<2x8x8xf32>
    "tpu.trace_stop"() : () -> ()
    %70 = vector.shape_cast %69 : vector<2x8x8xf32> to vector<16x8xf32>
    %71 = vector.extract_strided_slice %46 {offsets = [0, 0], sizes = [8, 32], strides = [1, 1]} : vector<32x32xf32> to vector<8x32xf32>
    %cst_36 = arith.constant dense<0.000000e+00> : vector<16x32xf32>
    %72 = tpu.matmul %70, %71, %cst_36 {dimension_numbers = #tpu.dot_dimension_numbers<[1], [0], [0], [1], [0, 0, 1, 1], [], []>} : vector<16x8xf32>, vector<8x32xf32>, vector<16x32xf32> -> vector<16x32xf32>
    %73 = arith.addf %47, %72 : vector<16x32xf32>
    %74 = vector.extract_strided_slice %38 {offsets = [0, 8], sizes = [16, 8], strides = [1, 1]} : vector<16x32xf32> to vector<16x8xf32>
    %75 = vector.shape_cast %74 : vector<16x8xf32> to vector<2x8x8xf32>
    %76 = vector.extract_strided_slice %41 {offsets = [0, 8], sizes = [16, 8], strides = [1, 1]} : vector<16x32xf32> to vector<16x8xf32>
    %77 = vector.shape_cast %76 : vector<16x8xf32> to vector<2x8x8xf32>
    %78 = vector.extract_strided_slice %44 {offsets = [0, 8], sizes = [16, 8], strides = [1, 1]} : vector<16x32xf32> to vector<16x8xf32>
    %79 = vector.shape_cast %78 : vector<16x8xf32> to vector<2x8x8xf32>
    "tpu.trace_start"() <{level = 10 : i32, message = "bqd,bkd->bqk"}> : () -> ()
    %cst_37 = arith.constant dense<0.000000e+00> : vector<2x8x8xf32>
    %80 = tpu.matmul %75, %77, %cst_37 {dimension_numbers = #tpu.dot_dimension_numbers<[2], [2], [1], [1], [0, 0, 0, 1, 1, 1], [0], [0]>} : vector<2x8x8xf32>, vector<2x8x8xf32>, vector<2x8x8xf32> -> vector<2x8x8xf32>
    %cst_38 = arith.constant -1.000000e+30 : f32
    "tpu.trace_stop"() : () -> ()
    %81 = vector.shape_cast %9 : vector<1x8x8xi1> to vector<1x8x8xi1>
    %82 = vector.broadcast %81 : vector<1x8x8xi1> to vector<2x8x8xi1>
    %83 = vector.broadcast %cst_38 : f32 to vector<2x8x8xf32>
    %84 = arith.select %82, %80, %83 : vector<2x8x8xi1>, vector<2x8x8xf32>
    %cst_39 = arith.constant dense<0xFF800000> : vector<2x8xf32>
    %85 = vector.multi_reduction <maximumf>, %84, %cst_39 [2] : vector<2x8x8xf32> to vector<2x8xf32>
    %86 = vector.shape_cast %85 : vector<2x8xf32> to vector<2x8x1xf32>
    %87 = vector.broadcast %86 : vector<2x8x1xf32> to vector<2x8x8xf32>
    %88 = arith.subf %84, %87 : vector<2x8x8xf32>
    %89 = math.exp %88 : vector<2x8x8xf32>
    %cst_40 = arith.constant dense<0.000000e+00> : vector<2x8xf32>
    %90 = vector.multi_reduction <add>, %89, %cst_40 [2] : vector<2x8x8xf32> to vector<2x8xf32>
    %91 = vector.shape_cast %90 : vector<2x8xf32> to vector<2x8x1xf32>
    %92 = tpu.reciprocal %91 {approx = true} : vector<2x8x1xf32> -> vector<2x8x1xf32>
    %93 = vector.broadcast %92 : vector<2x8x1xf32> to vector<2x8x8xf32>
    %94 = arith.mulf %89, %93 : vector<2x8x8xf32>
    "tpu.trace_start"() <{level = 10 : i32, message = "bqk,bkd->bqd"}> : () -> ()
    %cst_41 = arith.constant dense<0.000000e+00> : vector<2x8x8xf32>
    %95 = tpu.matmul %94, %79, %cst_41 {dimension_numbers = #tpu.dot_dimension_numbers<[2], [1], [1], [2], [0, 0, 0, 1, 1, 2], [0], [0]>} : vector<2x8x8xf32>, vector<2x8x8xf32>, vector<2x8x8xf32> -> vector<2x8x8xf32>
    "tpu.trace_stop"() : () -> ()
    %96 = vector.shape_cast %95 : vector<2x8x8xf32> to vector<16x8xf32>
    %97 = vector.extract_strided_slice %46 {offsets = [8, 0], sizes = [8, 32], strides = [1, 1]} : vector<32x32xf32> to vector<8x32xf32>
    %cst_42 = arith.constant dense<0.000000e+00> : vector<16x32xf32>
    %98 = tpu.matmul %96, %97, %cst_42 {dimension_numbers = #tpu.dot_dimension_numbers<[1], [0], [0], [1], [0, 0, 1, 1], [], []>} : vector<16x8xf32>, vector<8x32xf32>, vector<16x32xf32> -> vector<16x32xf32>
    %99 = arith.addf %73, %98 : vector<16x32xf32>
    %100 = vector.extract_strided_slice %38 {offsets = [0, 16], sizes = [16, 8], strides = [1, 1]} : vector<16x32xf32> to vector<16x8xf32>
    %101 = vector.shape_cast %100 : vector<16x8xf32> to vector<2x8x8xf32>
    %102 = vector.extract_strided_slice %41 {offsets = [0, 16], sizes = [16, 8], strides = [1, 1]} : vector<16x32xf32> to vector<16x8xf32>
    %103 = vector.shape_cast %102 : vector<16x8xf32> to vector<2x8x8xf32>
    %104 = vector.extract_strided_slice %44 {offsets = [0, 16], sizes = [16, 8], strides = [1, 1]} : vector<16x32xf32> to vector<16x8xf32>
    %105 = vector.shape_cast %104 : vector<16x8xf32> to vector<2x8x8xf32>
    "tpu.trace_start"() <{level = 10 : i32, message = "bqd,bkd->bqk"}> : () -> ()
    %cst_43 = arith.constant dense<0.000000e+00> : vector<2x8x8xf32>
    %106 = tpu.matmul %101, %103, %cst_43 {dimension_numbers = #tpu.dot_dimension_numbers<[2], [2], [1], [1], [0, 0, 0, 1, 1, 1], [0], [0]>} : vector<2x8x8xf32>, vector<2x8x8xf32>, vector<2x8x8xf32> -> vector<2x8x8xf32>
    %cst_44 = arith.constant -1.000000e+30 : f32
    "tpu.trace_stop"() : () -> ()
    %107 = vector.shape_cast %9 : vector<1x8x8xi1> to vector<1x8x8xi1>
    %108 = vector.broadcast %107 : vector<1x8x8xi1> to vector<2x8x8xi1>
    %109 = vector.broadcast %cst_44 : f32 to vector<2x8x8xf32>
    %110 = arith.select %108, %106, %109 : vector<2x8x8xi1>, vector<2x8x8xf32>
    %cst_45 = arith.constant dense<0xFF800000> : vector<2x8xf32>
    %111 = vector.multi_reduction <maximumf>, %110, %cst_45 [2] : vector<2x8x8xf32> to vector<2x8xf32>
    %112 = vector.shape_cast %111 : vector<2x8xf32> to vector<2x8x1xf32>
    %113 = vector.broadcast %112 : vector<2x8x1xf32> to vector<2x8x8xf32>
    %114 = arith.subf %110, %113 : vector<2x8x8xf32>
    %115 = math.exp %114 : vector<2x8x8xf32>
    %cst_46 = arith.constant dense<0.000000e+00> : vector<2x8xf32>
    %116 = vector.multi_reduction <add>, %115, %cst_46 [2] : vector<2x8x8xf32> to vector<2x8xf32>
    %117 = vector.shape_cast %116 : vector<2x8xf32> to vector<2x8x1xf32>
    %118 = tpu.reciprocal %117 {approx = true} : vector<2x8x1xf32> -> vector<2x8x1xf32>
    %119 = vector.broadcast %118 : vector<2x8x1xf32> to vector<2x8x8xf32>
    %120 = arith.mulf %115, %119 : vector<2x8x8xf32>
    "tpu.trace_start"() <{level = 10 : i32, message = "bqk,bkd->bqd"}> : () -> ()
    %cst_47 = arith.constant dense<0.000000e+00> : vector<2x8x8xf32>
    %121 = tpu.matmul %120, %105, %cst_47 {dimension_numbers = #tpu.dot_dimension_numbers<[2], [1], [1], [2], [0, 0, 0, 1, 1, 2], [0], [0]>} : vector<2x8x8xf32>, vector<2x8x8xf32>, vector<2x8x8xf32> -> vector<2x8x8xf32>
    "tpu.trace_stop"() : () -> ()
    %122 = vector.shape_cast %121 : vector<2x8x8xf32> to vector<16x8xf32>
    %123 = vector.extract_strided_slice %46 {offsets = [16, 0], sizes = [8, 32], strides = [1, 1]} : vector<32x32xf32> to vector<8x32xf32>
    %cst_48 = arith.constant dense<0.000000e+00> : vector<16x32xf32>
    %124 = tpu.matmul %122, %123, %cst_48 {dimension_numbers = #tpu.dot_dimension_numbers<[1], [0], [0], [1], [0, 0, 1, 1], [], []>} : vector<16x8xf32>, vector<8x32xf32>, vector<16x32xf32> -> vector<16x32xf32>
    %125 = arith.addf %99, %124 : vector<16x32xf32>
    %126 = vector.extract_strided_slice %38 {offsets = [0, 24], sizes = [16, 8], strides = [1, 1]} : vector<16x32xf32> to vector<16x8xf32>
    %127 = vector.shape_cast %126 : vector<16x8xf32> to vector<2x8x8xf32>
    %128 = vector.extract_strided_slice %41 {offsets = [0, 24], sizes = [16, 8], strides = [1, 1]} : vector<16x32xf32> to vector<16x8xf32>
    %129 = vector.shape_cast %128 : vector<16x8xf32> to vector<2x8x8xf32>
    %130 = vector.extract_strided_slice %44 {offsets = [0, 24], sizes = [16, 8], strides = [1, 1]} : vector<16x32xf32> to vector<16x8xf32>
    %131 = vector.shape_cast %130 : vector<16x8xf32> to vector<2x8x8xf32>
    "tpu.trace_start"() <{level = 10 : i32, message = "bqd,bkd->bqk"}> : () -> ()
    %cst_49 = arith.constant dense<0.000000e+00> : vector<2x8x8xf32>
    %132 = tpu.matmul %127, %129, %cst_49 {dimension_numbers = #tpu.dot_dimension_numbers<[2], [2], [1], [1], [0, 0, 0, 1, 1, 1], [0], [0]>} : vector<2x8x8xf32>, vector<2x8x8xf32>, vector<2x8x8xf32> -> vector<2x8x8xf32>
    %cst_50 = arith.constant -1.000000e+30 : f32
    "tpu.trace_stop"() : () -> ()
    %133 = vector.shape_cast %9 : vector<1x8x8xi1> to vector<1x8x8xi1>
    %134 = vector.broadcast %133 : vector<1x8x8xi1> to vector<2x8x8xi1>
    %135 = vector.broadcast %cst_50 : f32 to vector<2x8x8xf32>
    %136 = arith.select %134, %132, %135 : vector<2x8x8xi1>, vector<2x8x8xf32>
    %cst_51 = arith.constant dense<0xFF800000> : vector<2x8xf32>
    %137 = vector.multi_reduction <maximumf>, %136, %cst_51 [2] : vector<2x8x8xf32> to vector<2x8xf32>
    %138 = vector.shape_cast %137 : vector<2x8xf32> to vector<2x8x1xf32>
    %139 = vector.broadcast %138 : vector<2x8x1xf32> to vector<2x8x8xf32>
    %140 = arith.subf %136, %139 : vector<2x8x8xf32>
    %141 = math.exp %140 : vector<2x8x8xf32>
    %cst_52 = arith.constant dense<0.000000e+00> : vector<2x8xf32>
    %142 = vector.multi_reduction <add>, %141, %cst_52 [2] : vector<2x8x8xf32> to vector<2x8xf32>
    %143 = vector.shape_cast %142 : vector<2x8xf32> to vector<2x8x1xf32>
    %144 = tpu.reciprocal %143 {approx = true} : vector<2x8x1xf32> -> vector<2x8x1xf32>
    %145 = vector.broadcast %144 : vector<2x8x1xf32> to vector<2x8x8xf32>
    %146 = arith.mulf %141, %145 : vector<2x8x8xf32>
    "tpu.trace_start"() <{level = 10 : i32, message = "bqk,bkd->bqd"}> : () -> ()
    %cst_53 = arith.constant dense<0.000000e+00> : vector<2x8x8xf32>
    %147 = tpu.matmul %146, %131, %cst_53 {dimension_numbers = #tpu.dot_dimension_numbers<[2], [1], [1], [2], [0, 0, 0, 1, 1, 2], [0], [0]>} : vector<2x8x8xf32>, vector<2x8x8xf32>, vector<2x8x8xf32> -> vector<2x8x8xf32>
    "tpu.trace_stop"() : () -> ()
    %148 = vector.shape_cast %147 : vector<2x8x8xf32> to vector<16x8xf32>
    %149 = vector.extract_strided_slice %46 {offsets = [24, 0], sizes = [8, 32], strides = [1, 1]} : vector<32x32xf32> to vector<8x32xf32>
    %cst_54 = arith.constant dense<0.000000e+00> : vector<16x32xf32>
    %150 = tpu.matmul %148, %149, %cst_54 {dimension_numbers = #tpu.dot_dimension_numbers<[1], [0], [0], [1], [0, 0, 1, 1], [], []>} : vector<16x8xf32>, vector<8x32xf32>, vector<16x32xf32> -> vector<16x32xf32>
    %151 = arith.addf %125, %150 : vector<16x32xf32>
    %152 = arith.addf %5, %151 : vector<16x32xf32>
    %c0_55 = arith.constant 0 : index
    %c0_56 = arith.constant 0 : index
    %c0_57 = arith.constant 0 : index
    %153 = vector.load %arg8[%c0_55, %c0_56, %c0_57] : memref<2x1x32xf32, #tpu.memory_space<vmem>>, vector<1x1x32xf32>
    %154 = vector.shape_cast %153 : vector<1x1x32xf32> to vector<1x32xf32>
    %155 = vector.broadcast %154 : vector<1x32xf32> to vector<16x32xf32>
    %156 = arith.addf %152, %155 : vector<16x32xf32>
    %c0_58 = arith.constant 0 : index
    %c0_59 = arith.constant 0 : index
    %c0_60 = arith.constant 0 : index
    %157 = vector.load %arg9[%c0_58, %c0_59, %c0_60] : memref<2x1x32xf32, #tpu.memory_space<vmem>>, vector<1x1x32xf32>
    %158 = vector.shape_cast %157 : vector<1x1x32xf32> to vector<1x32xf32>
    %c0_61 = arith.constant 0 : index
    %c0_62 = arith.constant 0 : index
    %c0_63 = arith.constant 0 : index
    %159 = vector.load %arg10[%c0_61, %c0_62, %c0_63] : memref<2x1x32xf32, #tpu.memory_space<vmem>>, vector<1x1x32xf32>
    %160 = vector.shape_cast %159 : vector<1x1x32xf32> to vector<1x32xf32>
    %cst_64 = arith.constant dense<0.000000e+00> : vector<16xf32>
    %161 = vector.multi_reduction <add>, %156, %cst_64 [1] : vector<16x32xf32> to vector<16xf32>
    %162 = vector.shape_cast %161 : vector<16xf32> to vector<16x1xf32>
    %cst_65 = arith.constant 3.200000e+01 : f32
    %163 = vector.broadcast %cst_65 : f32 to vector<16x1xf32>
    %164 = arith.divf %162, %163 : vector<16x1xf32>
    %165 = vector.broadcast %164 : vector<16x1xf32> to vector<16x32xf32>
    %166 = arith.subf %156, %165 : vector<16x32xf32>
    %167 = arith.mulf %166, %166 : vector<16x32xf32>
    %cst_66 = arith.constant dense<0.000000e+00> : vector<16xf32>
    %168 = vector.multi_reduction <add>, %167, %cst_66 [1] : vector<16x32xf32> to vector<16xf32>
    %169 = vector.shape_cast %168 : vector<16xf32> to vector<16x1xf32>
    %cst_67 = arith.constant 3.200000e+01 : f32
    %170 = vector.broadcast %cst_67 : f32 to vector<16x1xf32>
    %171 = arith.divf %169, %170 : vector<16x1xf32>
    %cst_68 = arith.constant 9.99999974E-6 : f32
    %172 = vector.broadcast %cst_68 : f32 to vector<16x1xf32>
    %173 = arith.addf %171, %172 : vector<16x1xf32>
    %174 = math.rsqrt %173 : vector<16x1xf32>
    %175 = vector.broadcast %174 : vector<16x1xf32> to vector<16x32xf32>
    %176 = arith.mulf %166, %175 : vector<16x32xf32>
    %177 = vector.broadcast %158 : vector<1x32xf32> to vector<16x32xf32>
    %178 = arith.mulf %177, %176 : vector<16x32xf32>
    %179 = vector.broadcast %160 : vector<1x32xf32> to vector<16x32xf32>
    %180 = arith.addf %178, %179 : vector<16x32xf32>
    %c0_69 = arith.constant 0 : index
    %c0_70 = arith.constant 0 : index
    %c0_71 = arith.constant 0 : index
    %181 = vector.load %arg11[%c0_69, %c0_70, %c0_71] : memref<2x32x128xf32, #tpu.memory_space<vmem>>, vector<1x32x128xf32>
    %182 = vector.shape_cast %181 : vector<1x32x128xf32> to vector<32x128xf32>
    %cst_72 = arith.constant dense<0.000000e+00> : vector<16x128xf32>
    %183 = tpu.matmul %180, %182, %cst_72 {dimension_numbers = #tpu.dot_dimension_numbers<[1], [0], [0], [1], [0, 0, 1, 1], [], []>} : vector<16x32xf32>, vector<32x128xf32>, vector<16x128xf32> -> vector<16x128xf32>
    %c0_73 = arith.constant 0 : index
    %c0_74 = arith.constant 0 : index
    %c0_75 = arith.constant 0 : index
    %184 = vector.load %arg12[%c0_73, %c0_74, %c0_75] : memref<2x1x128xf32, #tpu.memory_space<vmem>>, vector<1x1x128xf32>
    %185 = vector.shape_cast %184 : vector<1x1x128xf32> to vector<1x128xf32>
    %186 = vector.broadcast %185 : vector<1x128xf32> to vector<16x128xf32>
    %187 = arith.addf %183, %186 : vector<16x128xf32>
    %cst_76 = arith.constant 5.000000e-01 : f32
    %188 = vector.broadcast %cst_76 : f32 to vector<16x128xf32>
    %189 = arith.mulf %188, %187 : vector<16x128xf32>
    %190 = arith.mulf %187, %187 : vector<16x128xf32>
    %191 = arith.mulf %190, %187 : vector<16x128xf32>
    %cst_77 = arith.constant 4.471500e-02 : f32
    %192 = vector.broadcast %cst_77 : f32 to vector<16x128xf32>
    %193 = arith.mulf %192, %191 : vector<16x128xf32>
    %194 = arith.addf %187, %193 : vector<16x128xf32>
    %cst_78 = arith.constant 0.797884583 : f32
    %195 = vector.broadcast %cst_78 : f32 to vector<16x128xf32>
    %196 = arith.mulf %195, %194 : vector<16x128xf32>
    %197 = math.tanh %196 : vector<16x128xf32>
    %cst_79 = arith.constant 1.000000e+00 : f32
    %198 = vector.broadcast %cst_79 : f32 to vector<16x128xf32>
    %199 = arith.addf %198, %197 : vector<16x128xf32>
    %200 = arith.mulf %189, %199 : vector<16x128xf32>
    %c0_80 = arith.constant 0 : index
    %c0_81 = arith.constant 0 : index
    %c0_82 = arith.constant 0 : index
    %201 = vector.load %arg13[%c0_80, %c0_81, %c0_82] : memref<2x128x32xf32, #tpu.memory_space<vmem>>, vector<1x128x32xf32>
    %202 = vector.shape_cast %201 : vector<1x128x32xf32> to vector<128x32xf32>
    %cst_83 = arith.constant dense<0.000000e+00> : vector<16x32xf32>
    %203 = tpu.matmul %200, %202, %cst_83 {dimension_numbers = #tpu.dot_dimension_numbers<[1], [0], [0], [1], [0, 0, 1, 1], [], []>} : vector<16x128xf32>, vector<128x32xf32>, vector<16x32xf32> -> vector<16x32xf32>
    %c0_84 = arith.constant 0 : index
    %c0_85 = arith.constant 0 : index
    %c0_86 = arith.constant 0 : index
    %204 = vector.load %arg14[%c0_84, %c0_85, %c0_86] : memref<2x1x32xf32, #tpu.memory_space<vmem>>, vector<1x1x32xf32>
    %205 = vector.shape_cast %204 : vector<1x1x32xf32> to vector<1x32xf32>
    %206 = vector.broadcast %205 : vector<1x32xf32> to vector<16x32xf32>
    %207 = arith.addf %203, %206 : vector<16x32xf32>
    %208 = arith.addf %156, %207 : vector<16x32xf32>
    %c1 = arith.constant 1 : index
    %c0_87 = arith.constant 0 : index
    %c0_88 = arith.constant 0 : index
    %209 = vector.load %arg2[%c1, %c0_87, %c0_88] : memref<2x1x32xf32, #tpu.memory_space<vmem>>, vector<1x1x32xf32>
    %210 = vector.shape_cast %209 : vector<1x1x32xf32> to vector<1x32xf32>
    %c1_89 = arith.constant 1 : index
    %c0_90 = arith.constant 0 : index
    %c0_91 = arith.constant 0 : index
    %211 = vector.load %arg3[%c1_89, %c0_90, %c0_91] : memref<2x1x32xf32, #tpu.memory_space<vmem>>, vector<1x1x32xf32>
    %212 = vector.shape_cast %211 : vector<1x1x32xf32> to vector<1x32xf32>
    %cst_92 = arith.constant dense<0.000000e+00> : vector<16xf32>
    %213 = vector.multi_reduction <add>, %208, %cst_92 [1] : vector<16x32xf32> to vector<16xf32>
    %214 = vector.shape_cast %213 : vector<16xf32> to vector<16x1xf32>
    %cst_93 = arith.constant 3.200000e+01 : f32
    %215 = vector.broadcast %cst_93 : f32 to vector<16x1xf32>
    %216 = arith.divf %214, %215 : vector<16x1xf32>
    %217 = vector.broadcast %216 : vector<16x1xf32> to vector<16x32xf32>
    %218 = arith.subf %208, %217 : vector<16x32xf32>
    %219 = arith.mulf %218, %218 : vector<16x32xf32>
    %cst_94 = arith.constant dense<0.000000e+00> : vector<16xf32>
    %220 = vector.multi_reduction <add>, %219, %cst_94 [1] : vector<16x32xf32> to vector<16xf32>
    %221 = vector.shape_cast %220 : vector<16xf32> to vector<16x1xf32>
    %cst_95 = arith.constant 3.200000e+01 : f32
    %222 = vector.broadcast %cst_95 : f32 to vector<16x1xf32>
    %223 = arith.divf %221, %222 : vector<16x1xf32>
    %cst_96 = arith.constant 9.99999974E-6 : f32
    %224 = vector.broadcast %cst_96 : f32 to vector<16x1xf32>
    %225 = arith.addf %223, %224 : vector<16x1xf32>
    %226 = math.rsqrt %225 : vector<16x1xf32>
    %227 = vector.broadcast %226 : vector<16x1xf32> to vector<16x32xf32>
    %228 = arith.mulf %218, %227 : vector<16x32xf32>
    %229 = vector.broadcast %210 : vector<1x32xf32> to vector<16x32xf32>
    %230 = arith.mulf %229, %228 : vector<16x32xf32>
    %231 = vector.broadcast %212 : vector<1x32xf32> to vector<16x32xf32>
    %232 = arith.addf %230, %231 : vector<16x32xf32>
    %c1_97 = arith.constant 1 : index
    %c0_98 = arith.constant 0 : index
    %c0_99 = arith.constant 0 : index
    %233 = vector.load %arg4[%c1_97, %c0_98, %c0_99] : memref<2x32x32xf32, #tpu.memory_space<vmem>>, vector<1x32x32xf32>
    %234 = vector.shape_cast %233 : vector<1x32x32xf32> to vector<32x32xf32>
    %cst_100 = arith.constant dense<0.000000e+00> : vector<16x32xf32>
    %235 = tpu.matmul %232, %234, %cst_100 {dimension_numbers = #tpu.dot_dimension_numbers<[1], [0], [0], [1], [0, 0, 1, 1], [], []>} : vector<16x32xf32>, vector<32x32xf32>, vector<16x32xf32> -> vector<16x32xf32>
    %cst_101 = arith.constant 0.353553385 : f32
    %236 = vector.broadcast %cst_101 : f32 to vector<16x32xf32>
    %237 = arith.mulf %235, %236 : vector<16x32xf32>
    %c1_102 = arith.constant 1 : index
    %c0_103 = arith.constant 0 : index
    %c0_104 = arith.constant 0 : index
    %238 = vector.load %arg5[%c1_102, %c0_103, %c0_104] : memref<2x32x32xf32, #tpu.memory_space<vmem>>, vector<1x32x32xf32>
    %239 = vector.shape_cast %238 : vector<1x32x32xf32> to vector<32x32xf32>
    %cst_105 = arith.constant dense<0.000000e+00> : vector<16x32xf32>
    %240 = tpu.matmul %232, %239, %cst_105 {dimension_numbers = #tpu.dot_dimension_numbers<[1], [0], [0], [1], [0, 0, 1, 1], [], []>} : vector<16x32xf32>, vector<32x32xf32>, vector<16x32xf32> -> vector<16x32xf32>
    %c1_106 = arith.constant 1 : index
    %c0_107 = arith.constant 0 : index
    %c0_108 = arith.constant 0 : index
    %241 = vector.load %arg6[%c1_106, %c0_107, %c0_108] : memref<2x32x32xf32, #tpu.memory_space<vmem>>, vector<1x32x32xf32>
    %242 = vector.shape_cast %241 : vector<1x32x32xf32> to vector<32x32xf32>
    %cst_109 = arith.constant dense<0.000000e+00> : vector<16x32xf32>
    %243 = tpu.matmul %232, %242, %cst_109 {dimension_numbers = #tpu.dot_dimension_numbers<[1], [0], [0], [1], [0, 0, 1, 1], [], []>} : vector<16x32xf32>, vector<32x32xf32>, vector<16x32xf32> -> vector<16x32xf32>
    %c1_110 = arith.constant 1 : index
    %c0_111 = arith.constant 0 : index
    %c0_112 = arith.constant 0 : index
    %244 = vector.load %arg7[%c1_110, %c0_111, %c0_112] : memref<2x32x32xf32, #tpu.memory_space<vmem>>, vector<1x32x32xf32>
    %245 = vector.shape_cast %244 : vector<1x32x32xf32> to vector<32x32xf32>
    %cst_113 = arith.constant 0.000000e+00 : f32
    %246 = vector.broadcast %cst_113 : f32 to vector<16x32xf32>
    %247 = vector.extract_strided_slice %237 {offsets = [0, 0], sizes = [16, 8], strides = [1, 1]} : vector<16x32xf32> to vector<16x8xf32>
    %248 = vector.shape_cast %247 : vector<16x8xf32> to vector<2x8x8xf32>
    %249 = vector.extract_strided_slice %240 {offsets = [0, 0], sizes = [16, 8], strides = [1, 1]} : vector<16x32xf32> to vector<16x8xf32>
    %250 = vector.shape_cast %249 : vector<16x8xf32> to vector<2x8x8xf32>
    %251 = vector.extract_strided_slice %243 {offsets = [0, 0], sizes = [16, 8], strides = [1, 1]} : vector<16x32xf32> to vector<16x8xf32>
    %252 = vector.shape_cast %251 : vector<16x8xf32> to vector<2x8x8xf32>
    "tpu.trace_start"() <{level = 10 : i32, message = "bqd,bkd->bqk"}> : () -> ()
    %cst_114 = arith.constant dense<0.000000e+00> : vector<2x8x8xf32>
    %253 = tpu.matmul %248, %250, %cst_114 {dimension_numbers = #tpu.dot_dimension_numbers<[2], [2], [1], [1], [0, 0, 0, 1, 1, 1], [0], [0]>} : vector<2x8x8xf32>, vector<2x8x8xf32>, vector<2x8x8xf32> -> vector<2x8x8xf32>
    %cst_115 = arith.constant -1.000000e+30 : f32
    "tpu.trace_stop"() : () -> ()
    %254 = vector.shape_cast %9 : vector<1x8x8xi1> to vector<1x8x8xi1>
    %255 = vector.broadcast %254 : vector<1x8x8xi1> to vector<2x8x8xi1>
    %256 = vector.broadcast %cst_115 : f32 to vector<2x8x8xf32>
    %257 = arith.select %255, %253, %256 : vector<2x8x8xi1>, vector<2x8x8xf32>
    %cst_116 = arith.constant dense<0xFF800000> : vector<2x8xf32>
    %258 = vector.multi_reduction <maximumf>, %257, %cst_116 [2] : vector<2x8x8xf32> to vector<2x8xf32>
    %259 = vector.shape_cast %258 : vector<2x8xf32> to vector<2x8x1xf32>
    %260 = vector.broadcast %259 : vector<2x8x1xf32> to vector<2x8x8xf32>
    %261 = arith.subf %257, %260 : vector<2x8x8xf32>
    %262 = math.exp %261 : vector<2x8x8xf32>
    %cst_117 = arith.constant dense<0.000000e+00> : vector<2x8xf32>
    %263 = vector.multi_reduction <add>, %262, %cst_117 [2] : vector<2x8x8xf32> to vector<2x8xf32>
    %264 = vector.shape_cast %263 : vector<2x8xf32> to vector<2x8x1xf32>
    %265 = tpu.reciprocal %264 {approx = true} : vector<2x8x1xf32> -> vector<2x8x1xf32>
    %266 = vector.broadcast %265 : vector<2x8x1xf32> to vector<2x8x8xf32>
    %267 = arith.mulf %262, %266 : vector<2x8x8xf32>
    "tpu.trace_start"() <{level = 10 : i32, message = "bqk,bkd->bqd"}> : () -> ()
    %cst_118 = arith.constant dense<0.000000e+00> : vector<2x8x8xf32>
    %268 = tpu.matmul %267, %252, %cst_118 {dimension_numbers = #tpu.dot_dimension_numbers<[2], [1], [1], [2], [0, 0, 0, 1, 1, 2], [0], [0]>} : vector<2x8x8xf32>, vector<2x8x8xf32>, vector<2x8x8xf32> -> vector<2x8x8xf32>
    "tpu.trace_stop"() : () -> ()
    %269 = vector.shape_cast %268 : vector<2x8x8xf32> to vector<16x8xf32>
    %270 = vector.extract_strided_slice %245 {offsets = [0, 0], sizes = [8, 32], strides = [1, 1]} : vector<32x32xf32> to vector<8x32xf32>
    %cst_119 = arith.constant dense<0.000000e+00> : vector<16x32xf32>
    %271 = tpu.matmul %269, %270, %cst_119 {dimension_numbers = #tpu.dot_dimension_numbers<[1], [0], [0], [1], [0, 0, 1, 1], [], []>} : vector<16x8xf32>, vector<8x32xf32>, vector<16x32xf32> -> vector<16x32xf32>
    %272 = arith.addf %246, %271 : vector<16x32xf32>
    %273 = vector.extract_strided_slice %237 {offsets = [0, 8], sizes = [16, 8], strides = [1, 1]} : vector<16x32xf32> to vector<16x8xf32>
    %274 = vector.shape_cast %273 : vector<16x8xf32> to vector<2x8x8xf32>
    %275 = vector.extract_strided_slice %240 {offsets = [0, 8], sizes = [16, 8], strides = [1, 1]} : vector<16x32xf32> to vector<16x8xf32>
    %276 = vector.shape_cast %275 : vector<16x8xf32> to vector<2x8x8xf32>
    %277 = vector.extract_strided_slice %243 {offsets = [0, 8], sizes = [16, 8], strides = [1, 1]} : vector<16x32xf32> to vector<16x8xf32>
    %278 = vector.shape_cast %277 : vector<16x8xf32> to vector<2x8x8xf32>
    "tpu.trace_start"() <{level = 10 : i32, message = "bqd,bkd->bqk"}> : () -> ()
    %cst_120 = arith.constant dense<0.000000e+00> : vector<2x8x8xf32>
    %279 = tpu.matmul %274, %276, %cst_120 {dimension_numbers = #tpu.dot_dimension_numbers<[2], [2], [1], [1], [0, 0, 0, 1, 1, 1], [0], [0]>} : vector<2x8x8xf32>, vector<2x8x8xf32>, vector<2x8x8xf32> -> vector<2x8x8xf32>
    %cst_121 = arith.constant -1.000000e+30 : f32
    "tpu.trace_stop"() : () -> ()
    %280 = vector.shape_cast %9 : vector<1x8x8xi1> to vector<1x8x8xi1>
    %281 = vector.broadcast %280 : vector<1x8x8xi1> to vector<2x8x8xi1>
    %282 = vector.broadcast %cst_121 : f32 to vector<2x8x8xf32>
    %283 = arith.select %281, %279, %282 : vector<2x8x8xi1>, vector<2x8x8xf32>
    %cst_122 = arith.constant dense<0xFF800000> : vector<2x8xf32>
    %284 = vector.multi_reduction <maximumf>, %283, %cst_122 [2] : vector<2x8x8xf32> to vector<2x8xf32>
    %285 = vector.shape_cast %284 : vector<2x8xf32> to vector<2x8x1xf32>
    %286 = vector.broadcast %285 : vector<2x8x1xf32> to vector<2x8x8xf32>
    %287 = arith.subf %283, %286 : vector<2x8x8xf32>
    %288 = math.exp %287 : vector<2x8x8xf32>
    %cst_123 = arith.constant dense<0.000000e+00> : vector<2x8xf32>
    %289 = vector.multi_reduction <add>, %288, %cst_123 [2] : vector<2x8x8xf32> to vector<2x8xf32>
    %290 = vector.shape_cast %289 : vector<2x8xf32> to vector<2x8x1xf32>
    %291 = tpu.reciprocal %290 {approx = true} : vector<2x8x1xf32> -> vector<2x8x1xf32>
    %292 = vector.broadcast %291 : vector<2x8x1xf32> to vector<2x8x8xf32>
    %293 = arith.mulf %288, %292 : vector<2x8x8xf32>
    "tpu.trace_start"() <{level = 10 : i32, message = "bqk,bkd->bqd"}> : () -> ()
    %cst_124 = arith.constant dense<0.000000e+00> : vector<2x8x8xf32>
    %294 = tpu.matmul %293, %278, %cst_124 {dimension_numbers = #tpu.dot_dimension_numbers<[2], [1], [1], [2], [0, 0, 0, 1, 1, 2], [0], [0]>} : vector<2x8x8xf32>, vector<2x8x8xf32>, vector<2x8x8xf32> -> vector<2x8x8xf32>
    "tpu.trace_stop"() : () -> ()
    %295 = vector.shape_cast %294 : vector<2x8x8xf32> to vector<16x8xf32>
    %296 = vector.extract_strided_slice %245 {offsets = [8, 0], sizes = [8, 32], strides = [1, 1]} : vector<32x32xf32> to vector<8x32xf32>
    %cst_125 = arith.constant dense<0.000000e+00> : vector<16x32xf32>
    %297 = tpu.matmul %295, %296, %cst_125 {dimension_numbers = #tpu.dot_dimension_numbers<[1], [0], [0], [1], [0, 0, 1, 1], [], []>} : vector<16x8xf32>, vector<8x32xf32>, vector<16x32xf32> -> vector<16x32xf32>
    %298 = arith.addf %272, %297 : vector<16x32xf32>
    %299 = vector.extract_strided_slice %237 {offsets = [0, 16], sizes = [16, 8], strides = [1, 1]} : vector<16x32xf32> to vector<16x8xf32>
    %300 = vector.shape_cast %299 : vector<16x8xf32> to vector<2x8x8xf32>
    %301 = vector.extract_strided_slice %240 {offsets = [0, 16], sizes = [16, 8], strides = [1, 1]} : vector<16x32xf32> to vector<16x8xf32>
    %302 = vector.shape_cast %301 : vector<16x8xf32> to vector<2x8x8xf32>
    %303 = vector.extract_strided_slice %243 {offsets = [0, 16], sizes = [16, 8], strides = [1, 1]} : vector<16x32xf32> to vector<16x8xf32>
    %304 = vector.shape_cast %303 : vector<16x8xf32> to vector<2x8x8xf32>
    "tpu.trace_start"() <{level = 10 : i32, message = "bqd,bkd->bqk"}> : () -> ()
    %cst_126 = arith.constant dense<0.000000e+00> : vector<2x8x8xf32>
    %305 = tpu.matmul %300, %302, %cst_126 {dimension_numbers = #tpu.dot_dimension_numbers<[2], [2], [1], [1], [0, 0, 0, 1, 1, 1], [0], [0]>} : vector<2x8x8xf32>, vector<2x8x8xf32>, vector<2x8x8xf32> -> vector<2x8x8xf32>
    %cst_127 = arith.constant -1.000000e+30 : f32
    "tpu.trace_stop"() : () -> ()
    %306 = vector.shape_cast %9 : vector<1x8x8xi1> to vector<1x8x8xi1>
    %307 = vector.broadcast %306 : vector<1x8x8xi1> to vector<2x8x8xi1>
    %308 = vector.broadcast %cst_127 : f32 to vector<2x8x8xf32>
    %309 = arith.select %307, %305, %308 : vector<2x8x8xi1>, vector<2x8x8xf32>
    %cst_128 = arith.constant dense<0xFF800000> : vector<2x8xf32>
    %310 = vector.multi_reduction <maximumf>, %309, %cst_128 [2] : vector<2x8x8xf32> to vector<2x8xf32>
    %311 = vector.shape_cast %310 : vector<2x8xf32> to vector<2x8x1xf32>
    %312 = vector.broadcast %311 : vector<2x8x1xf32> to vector<2x8x8xf32>
    %313 = arith.subf %309, %312 : vector<2x8x8xf32>
    %314 = math.exp %313 : vector<2x8x8xf32>
    %cst_129 = arith.constant dense<0.000000e+00> : vector<2x8xf32>
    %315 = vector.multi_reduction <add>, %314, %cst_129 [2] : vector<2x8x8xf32> to vector<2x8xf32>
    %316 = vector.shape_cast %315 : vector<2x8xf32> to vector<2x8x1xf32>
    %317 = tpu.reciprocal %316 {approx = true} : vector<2x8x1xf32> -> vector<2x8x1xf32>
    %318 = vector.broadcast %317 : vector<2x8x1xf32> to vector<2x8x8xf32>
    %319 = arith.mulf %314, %318 : vector<2x8x8xf32>
    "tpu.trace_start"() <{level = 10 : i32, message = "bqk,bkd->bqd"}> : () -> ()
    %cst_130 = arith.constant dense<0.000000e+00> : vector<2x8x8xf32>
    %320 = tpu.matmul %319, %304, %cst_130 {dimension_numbers = #tpu.dot_dimension_numbers<[2], [1], [1], [2], [0, 0, 0, 1, 1, 2], [0], [0]>} : vector<2x8x8xf32>, vector<2x8x8xf32>, vector<2x8x8xf32> -> vector<2x8x8xf32>
    "tpu.trace_stop"() : () -> ()
    %321 = vector.shape_cast %320 : vector<2x8x8xf32> to vector<16x8xf32>
    %322 = vector.extract_strided_slice %245 {offsets = [16, 0], sizes = [8, 32], strides = [1, 1]} : vector<32x32xf32> to vector<8x32xf32>
    %cst_131 = arith.constant dense<0.000000e+00> : vector<16x32xf32>
    %323 = tpu.matmul %321, %322, %cst_131 {dimension_numbers = #tpu.dot_dimension_numbers<[1], [0], [0], [1], [0, 0, 1, 1], [], []>} : vector<16x8xf32>, vector<8x32xf32>, vector<16x32xf32> -> vector<16x32xf32>
    %324 = arith.addf %298, %323 : vector<16x32xf32>
    %325 = vector.extract_strided_slice %237 {offsets = [0, 24], sizes = [16, 8], strides = [1, 1]} : vector<16x32xf32> to vector<16x8xf32>
    %326 = vector.shape_cast %325 : vector<16x8xf32> to vector<2x8x8xf32>
    %327 = vector.extract_strided_slice %240 {offsets = [0, 24], sizes = [16, 8], strides = [1, 1]} : vector<16x32xf32> to vector<16x8xf32>
    %328 = vector.shape_cast %327 : vector<16x8xf32> to vector<2x8x8xf32>
    %329 = vector.extract_strided_slice %243 {offsets = [0, 24], sizes = [16, 8], strides = [1, 1]} : vector<16x32xf32> to vector<16x8xf32>
    %330 = vector.shape_cast %329 : vector<16x8xf32> to vector<2x8x8xf32>
    "tpu.trace_start"() <{level = 10 : i32, message = "bqd,bkd->bqk"}> : () -> ()
    %cst_132 = arith.constant dense<0.000000e+00> : vector<2x8x8xf32>
    %331 = tpu.matmul %326, %328, %cst_132 {dimension_numbers = #tpu.dot_dimension_numbers<[2], [2], [1], [1], [0, 0, 0, 1, 1, 1], [0], [0]>} : vector<2x8x8xf32>, vector<2x8x8xf32>, vector<2x8x8xf32> -> vector<2x8x8xf32>
    %cst_133 = arith.constant -1.000000e+30 : f32
    "tpu.trace_stop"() : () -> ()
    %332 = vector.shape_cast %9 : vector<1x8x8xi1> to vector<1x8x8xi1>
    %333 = vector.broadcast %332 : vector<1x8x8xi1> to vector<2x8x8xi1>
    %334 = vector.broadcast %cst_133 : f32 to vector<2x8x8xf32>
    %335 = arith.select %333, %331, %334 : vector<2x8x8xi1>, vector<2x8x8xf32>
    %cst_134 = arith.constant dense<0xFF800000> : vector<2x8xf32>
    %336 = vector.multi_reduction <maximumf>, %335, %cst_134 [2] : vector<2x8x8xf32> to vector<2x8xf32>
    %337 = vector.shape_cast %336 : vector<2x8xf32> to vector<2x8x1xf32>
    %338 = vector.broadcast %337 : vector<2x8x1xf32> to vector<2x8x8xf32>
    %339 = arith.subf %335, %338 : vector<2x8x8xf32>
    %340 = math.exp %339 : vector<2x8x8xf32>
    %cst_135 = arith.constant dense<0.000000e+00> : vector<2x8xf32>
    %341 = vector.multi_reduction <add>, %340, %cst_135 [2] : vector<2x8x8xf32> to vector<2x8xf32>
    %342 = vector.shape_cast %341 : vector<2x8xf32> to vector<2x8x1xf32>
    %343 = tpu.reciprocal %342 {approx = true} : vector<2x8x1xf32> -> vector<2x8x1xf32>
    %344 = vector.broadcast %343 : vector<2x8x1xf32> to vector<2x8x8xf32>
    %345 = arith.mulf %340, %344 : vector<2x8x8xf32>
    "tpu.trace_start"() <{level = 10 : i32, message = "bqk,bkd->bqd"}> : () -> ()
    %cst_136 = arith.constant dense<0.000000e+00> : vector<2x8x8xf32>
    %346 = tpu.matmul %345, %330, %cst_136 {dimension_numbers = #tpu.dot_dimension_numbers<[2], [1], [1], [2], [0, 0, 0, 1, 1, 2], [0], [0]>} : vector<2x8x8xf32>, vector<2x8x8xf32>, vector<2x8x8xf32> -> vector<2x8x8xf32>
    "tpu.trace_stop"() : () -> ()
    %347 = vector.shape_cast %346 : vector<2x8x8xf32> to vector<16x8xf32>
    %348 = vector.extract_strided_slice %245 {offsets = [24, 0], sizes = [8, 32], strides = [1, 1]} : vector<32x32xf32> to vector<8x32xf32>
    %cst_137 = arith.constant dense<0.000000e+00> : vector<16x32xf32>
    %349 = tpu.matmul %347, %348, %cst_137 {dimension_numbers = #tpu.dot_dimension_numbers<[1], [0], [0], [1], [0, 0, 1, 1], [], []>} : vector<16x8xf32>, vector<8x32xf32>, vector<16x32xf32> -> vector<16x32xf32>
    %350 = arith.addf %324, %349 : vector<16x32xf32>
    %351 = arith.addf %208, %350 : vector<16x32xf32>
    %c1_138 = arith.constant 1 : index
    %c0_139 = arith.constant 0 : index
    %c0_140 = arith.constant 0 : index
    %352 = vector.load %arg8[%c1_138, %c0_139, %c0_140] : memref<2x1x32xf32, #tpu.memory_space<vmem>>, vector<1x1x32xf32>
    %353 = vector.shape_cast %352 : vector<1x1x32xf32> to vector<1x32xf32>
    %354 = vector.broadcast %353 : vector<1x32xf32> to vector<16x32xf32>
    %355 = arith.addf %351, %354 : vector<16x32xf32>
    %c1_141 = arith.constant 1 : index
    %c0_142 = arith.constant 0 : index
    %c0_143 = arith.constant 0 : index
    %356 = vector.load %arg9[%c1_141, %c0_142, %c0_143] : memref<2x1x32xf32, #tpu.memory_space<vmem>>, vector<1x1x32xf32>
    %357 = vector.shape_cast %356 : vector<1x1x32xf32> to vector<1x32xf32>
    %c1_144 = arith.constant 1 : index
    %c0_145 = arith.constant 0 : index
    %c0_146 = arith.constant 0 : index
    %358 = vector.load %arg10[%c1_144, %c0_145, %c0_146] : memref<2x1x32xf32, #tpu.memory_space<vmem>>, vector<1x1x32xf32>
    %359 = vector.shape_cast %358 : vector<1x1x32xf32> to vector<1x32xf32>
    %cst_147 = arith.constant dense<0.000000e+00> : vector<16xf32>
    %360 = vector.multi_reduction <add>, %355, %cst_147 [1] : vector<16x32xf32> to vector<16xf32>
    %361 = vector.shape_cast %360 : vector<16xf32> to vector<16x1xf32>
    %cst_148 = arith.constant 3.200000e+01 : f32
    %362 = vector.broadcast %cst_148 : f32 to vector<16x1xf32>
    %363 = arith.divf %361, %362 : vector<16x1xf32>
    %364 = vector.broadcast %363 : vector<16x1xf32> to vector<16x32xf32>
    %365 = arith.subf %355, %364 : vector<16x32xf32>
    %366 = arith.mulf %365, %365 : vector<16x32xf32>
    %cst_149 = arith.constant dense<0.000000e+00> : vector<16xf32>
    %367 = vector.multi_reduction <add>, %366, %cst_149 [1] : vector<16x32xf32> to vector<16xf32>
    %368 = vector.shape_cast %367 : vector<16xf32> to vector<16x1xf32>
    %cst_150 = arith.constant 3.200000e+01 : f32
    %369 = vector.broadcast %cst_150 : f32 to vector<16x1xf32>
    %370 = arith.divf %368, %369 : vector<16x1xf32>
    %cst_151 = arith.constant 9.99999974E-6 : f32
    %371 = vector.broadcast %cst_151 : f32 to vector<16x1xf32>
    %372 = arith.addf %370, %371 : vector<16x1xf32>
    %373 = math.rsqrt %372 : vector<16x1xf32>
    %374 = vector.broadcast %373 : vector<16x1xf32> to vector<16x32xf32>
    %375 = arith.mulf %365, %374 : vector<16x32xf32>
    %376 = vector.broadcast %357 : vector<1x32xf32> to vector<16x32xf32>
    %377 = arith.mulf %376, %375 : vector<16x32xf32>
    %378 = vector.broadcast %359 : vector<1x32xf32> to vector<16x32xf32>
    %379 = arith.addf %377, %378 : vector<16x32xf32>
    %c1_152 = arith.constant 1 : index
    %c0_153 = arith.constant 0 : index
    %c0_154 = arith.constant 0 : index
    %380 = vector.load %arg11[%c1_152, %c0_153, %c0_154] : memref<2x32x128xf32, #tpu.memory_space<vmem>>, vector<1x32x128xf32>
    %381 = vector.shape_cast %380 : vector<1x32x128xf32> to vector<32x128xf32>
    %cst_155 = arith.constant dense<0.000000e+00> : vector<16x128xf32>
    %382 = tpu.matmul %379, %381, %cst_155 {dimension_numbers = #tpu.dot_dimension_numbers<[1], [0], [0], [1], [0, 0, 1, 1], [], []>} : vector<16x32xf32>, vector<32x128xf32>, vector<16x128xf32> -> vector<16x128xf32>
    %c1_156 = arith.constant 1 : index
    %c0_157 = arith.constant 0 : index
    %c0_158 = arith.constant 0 : index
    %383 = vector.load %arg12[%c1_156, %c0_157, %c0_158] : memref<2x1x128xf32, #tpu.memory_space<vmem>>, vector<1x1x128xf32>
    %384 = vector.shape_cast %383 : vector<1x1x128xf32> to vector<1x128xf32>
    %385 = vector.broadcast %384 : vector<1x128xf32> to vector<16x128xf32>
    %386 = arith.addf %382, %385 : vector<16x128xf32>
    %cst_159 = arith.constant 5.000000e-01 : f32
    %387 = vector.broadcast %cst_159 : f32 to vector<16x128xf32>
    %388 = arith.mulf %387, %386 : vector<16x128xf32>
    %389 = arith.mulf %386, %386 : vector<16x128xf32>
    %390 = arith.mulf %389, %386 : vector<16x128xf32>
    %cst_160 = arith.constant 4.471500e-02 : f32
    %391 = vector.broadcast %cst_160 : f32 to vector<16x128xf32>
    %392 = arith.mulf %391, %390 : vector<16x128xf32>
    %393 = arith.addf %386, %392 : vector<16x128xf32>
    %cst_161 = arith.constant 0.797884583 : f32
    %394 = vector.broadcast %cst_161 : f32 to vector<16x128xf32>
    %395 = arith.mulf %394, %393 : vector<16x128xf32>
    %396 = math.tanh %395 : vector<16x128xf32>
    %cst_162 = arith.constant 1.000000e+00 : f32
    %397 = vector.broadcast %cst_162 : f32 to vector<16x128xf32>
    %398 = arith.addf %397, %396 : vector<16x128xf32>
    %399 = arith.mulf %388, %398 : vector<16x128xf32>
    %c1_163 = arith.constant 1 : index
    %c0_164 = arith.constant 0 : index
    %c0_165 = arith.constant 0 : index
    %400 = vector.load %arg13[%c1_163, %c0_164, %c0_165] : memref<2x128x32xf32, #tpu.memory_space<vmem>>, vector<1x128x32xf32>
    %401 = vector.shape_cast %400 : vector<1x128x32xf32> to vector<128x32xf32>
    %cst_166 = arith.constant dense<0.000000e+00> : vector<16x32xf32>
    %402 = tpu.matmul %399, %401, %cst_166 {dimension_numbers = #tpu.dot_dimension_numbers<[1], [0], [0], [1], [0, 0, 1, 1], [], []>} : vector<16x128xf32>, vector<128x32xf32>, vector<16x32xf32> -> vector<16x32xf32>
    %c1_167 = arith.constant 1 : index
    %c0_168 = arith.constant 0 : index
    %c0_169 = arith.constant 0 : index
    %403 = vector.load %arg14[%c1_167, %c0_168, %c0_169] : memref<2x1x32xf32, #tpu.memory_space<vmem>>, vector<1x1x32xf32>
    %404 = vector.shape_cast %403 : vector<1x1x32xf32> to vector<1x32xf32>
    %405 = vector.broadcast %404 : vector<1x32xf32> to vector<16x32xf32>
    %406 = arith.addf %402, %405 : vector<16x32xf32>
    %407 = arith.addf %355, %406 : vector<16x32xf32>
    %c0_170 = arith.constant 0 : index
    %c0_171 = arith.constant 0 : index
    %408 = vector.load %arg15[%c0_170, %c0_171] : memref<1x32xf32, #tpu.memory_space<vmem>>, vector<1x32xf32>
    %c0_172 = arith.constant 0 : index
    %c0_173 = arith.constant 0 : index
    %409 = vector.load %arg16[%c0_172, %c0_173] : memref<1x32xf32, #tpu.memory_space<vmem>>, vector<1x32xf32>
    %cst_174 = arith.constant dense<0.000000e+00> : vector<16xf32>
    %410 = vector.multi_reduction <add>, %407, %cst_174 [1] : vector<16x32xf32> to vector<16xf32>
    %411 = vector.shape_cast %410 : vector<16xf32> to vector<16x1xf32>
    %cst_175 = arith.constant 3.200000e+01 : f32
    %412 = vector.broadcast %cst_175 : f32 to vector<16x1xf32>
    %413 = arith.divf %411, %412 : vector<16x1xf32>
    %414 = vector.broadcast %413 : vector<16x1xf32> to vector<16x32xf32>
    %415 = arith.subf %407, %414 : vector<16x32xf32>
    %416 = arith.mulf %415, %415 : vector<16x32xf32>
    %cst_176 = arith.constant dense<0.000000e+00> : vector<16xf32>
    %417 = vector.multi_reduction <add>, %416, %cst_176 [1] : vector<16x32xf32> to vector<16xf32>
    %418 = vector.shape_cast %417 : vector<16xf32> to vector<16x1xf32>
    %cst_177 = arith.constant 3.200000e+01 : f32
    %419 = vector.broadcast %cst_177 : f32 to vector<16x1xf32>
    %420 = arith.divf %418, %419 : vector<16x1xf32>
    %cst_178 = arith.constant 9.99999974E-6 : f32
    %421 = vector.broadcast %cst_178 : f32 to vector<16x1xf32>
    %422 = arith.addf %420, %421 : vector<16x1xf32>
    %423 = math.rsqrt %422 : vector<16x1xf32>
    %424 = vector.broadcast %423 : vector<16x1xf32> to vector<16x32xf32>
    %425 = arith.mulf %415, %424 : vector<16x32xf32>
    %426 = vector.broadcast %408 : vector<1x32xf32> to vector<16x32xf32>
    %427 = arith.mulf %426, %425 : vector<16x32xf32>
    %428 = vector.broadcast %409 : vector<1x32xf32> to vector<16x32xf32>
    %429 = arith.addf %427, %428 : vector<16x32xf32>
    %c0_179 = arith.constant 0 : index
    %c0_180 = arith.constant 0 : index
    %430 = vector.load %arg17[%c0_179, %c0_180] : memref<32x256xf32, #tpu.memory_space<vmem>>, vector<32x256xf32>
    %cst_181 = arith.constant dense<0.000000e+00> : vector<16x256xf32>
    %431 = tpu.matmul %429, %430, %cst_181 {dimension_numbers = #tpu.dot_dimension_numbers<[1], [0], [0], [1], [0, 0, 1, 1], [], []>} : vector<16x32xf32>, vector<32x256xf32>, vector<16x256xf32> -> vector<16x256xf32>
    %c0_182 = arith.constant 0 : index
    %c0_183 = arith.constant 0 : index
    %432 = vector.load %arg18[%c0_182, %c0_183] : memref<16x256xf32, #tpu.memory_space<vmem>>, vector<16x256xf32>
    tpu.vector_store %arg18[%c0_182, %c0_183], %431 {strides = array<i32>} : memref<16x256xf32, #tpu.memory_space<vmem>>, vector<16x256xf32>,
    return
  }
}

</mosaic_0001>

<llo_original>
// kernel: gpt_forward.1
$region0: #{gpt_forward.1}
  #allocation0 [shape = 'u32[]', space=smem, size = 0x4, offset = 0x4, fixed_abs, tag = 'smem constant byte address 0x4 - core index']
  #allocation1 [shape = 'u32[72,128]{1,0:T(1,128)}', space=vmem, size = 0x9000, scoped, tag = 'internal scratch']
  %s0 = inlined_call_operand.vmem [shape: f32[2,8,32], index: 0, kind: input, shape index: {}]
  %s1 = inlined_call_operand.vmem [shape: f32[8,32], index: 1, kind: input, shape index: {}]
  %s2 = inlined_call_operand.vmem [shape: f32[2,1,32], index: 2, kind: input, shape index: {}]
  %s3 = inlined_call_operand.vmem [shape: f32[2,1,32], index: 3, kind: input, shape index: {}]
  %s4 = inlined_call_operand.vmem [shape: f32[2,32,32], index: 4, kind: input, shape index: {}]
  %s5 = inlined_call_operand.vmem [shape: f32[2,32,32], index: 5, kind: input, shape index: {}]
  %s6 = inlined_call_operand.vmem [shape: f32[2,32,32], index: 6, kind: input, shape index: {}]
  %s7 = inlined_call_operand.vmem [shape: f32[2,32,32], index: 7, kind: input, shape index: {}]
  %s8 = inlined_call_operand.vmem [shape: f32[2,1,32], index: 8, kind: input, shape index: {}]
  %s9 = inlined_call_operand.vmem [shape: f32[2,1,32], index: 9, kind: input, shape index: {}]
  %s10 = inlined_call_operand.vmem [shape: f32[2,1,32], index: 10, kind: input, shape index: {}]
  %s11 = inlined_call_operand.vmem [shape: f32[2,32,128], index: 11, kind: input, shape index: {}]
  %s12 = inlined_call_operand.vmem [shape: f32[2,1,128], index: 12, kind: input, shape index: {}]
  %s13 = inlined_call_operand.vmem [shape: f32[2,128,32], index: 13, kind: input, shape index: {}]
  %s14 = inlined_call_operand.vmem [shape: f32[2,1,32], index: 14, kind: input, shape index: {}]
  %s15 = inlined_call_operand.vmem [shape: f32[1,32], index: 15, kind: input, shape index: {}]
  %s16 = inlined_call_operand.vmem [shape: f32[1,32], index: 16, kind: input, shape index: {}]
  %s17 = inlined_call_operand.vmem [shape: f32[32,256], index: 17, kind: input, shape index: {}]
  %s18 = inlined_call_operand.hbm [shape: f32[16,256], index: 18, kind: output, shape index: {}]
  %s19 = sld [smem:[#allocation0]]
  $region82: #{gpt_forward.1} parent=0
    _
  %s21 = ssub.s32 1, %s19
  %s22 = scalar_select 0, %s21, %s19
  $region1: #{gpt_forward.1} parent=0
    #allocation2 [shape = 'u8[16384]{0}', space=vmem, size = 0x4000, scoped, tag = 'output window, operand 0, single buffered']
    #allocation3 [shape = 's32[1]{0}', space=sflag, size = 0x4, scoped, tag = 'scoped memory for gpt_forward.1']
    %23 = vsyncpa [#allocation3], 0
    // Predicated region
    $region2: #{gpt_forward.1} parent=1 // pred_check
      _
    $region3: #{gpt_forward.1} parent=1 // pred_check_branch
      %25 = sbr.rel (0) target = $region5
    $region4: #{gpt_forward.1} parent=1 // pred_region
      _
    $region5: #{gpt_forward.1} parent=1 // pred_fallthru
      _
    // Predicated region
    $region6: #{gpt_forward.1} parent=1 // pred_check
      _
    $region7: #{gpt_forward.1} parent=1 // pred_check_branch
      %27 = sbr.rel (0) target = $region9
    $region8: #{gpt_forward.1} parent=1 // pred_region
      _
    $region9: #{gpt_forward.1} parent=1 // pred_fallthru
      _
    // Predicated region
    $region10: #{gpt_forward.1} parent=1 // pred_check
      _
    $region11: #{gpt_forward.1} parent=1 // pred_check_branch
      %29 = sbr.rel (0) target = $region13
    $region12: #{gpt_forward.1} parent=1 // pred_region
      _
    $region13: #{gpt_forward.1} parent=1 // pred_fallthru
      _
    // Predicated region
    $region14: #{gpt_forward.1} parent=1 // pred_check
      _
    $region15: #{gpt_forward.1} parent=1 // pred_check_branch
      %31 = sbr.rel (0) target = $region17
    $region16: #{gpt_forward.1} parent=1 // pred_region
      _
    $region17: #{gpt_forward.1} parent=1 // pred_fallthru
      _
    // Predicated region
    $region18: #{gpt_forward.1} parent=1 // pred_check
      _
    $region19: #{gpt_forward.1} parent=1 // pred_check_branch
      %33 = sbr.rel (0) target = $region21
    $region20: #{gpt_forward.1} parent=1 // pred_region
      _
    $region21: #{gpt_forward.1} parent=1 // pred_fallthru
      _
    // Predicated region
    $region22: #{gpt_forward.1} parent=1 // pred_check
      _
    $region23: #{gpt_forward.1} parent=1 // pred_check_branch
      %35 = sbr.rel (0) target = $region25
    $region24: #{gpt_forward.1} parent=1 // pred_region
      _
    $region25: #{gpt_forward.1} parent=1 // pred_fallthru
      _
    // Predicated region
    $region26: #{gpt_forward.1} parent=1 // pred_check
      _
    $region27: #{gpt_forward.1} parent=1 // pred_check_branch
      %37 = sbr.rel (0) target = $region29
    $region28: #{gpt_forward.1} parent=1 // pred_region
      _
    $region29: #{gpt_forward.1} parent=1 // pred_fallthru
      _
    // Predicated region
    $region30: #{gpt_forward.1} parent=1 // pred_check
      _
    $region31: #{gpt_forward.1} parent=1 // pred_check_branch
      %39 = sbr.rel (0) target = $region33
    $region32: #{gpt_forward.1} parent=1 // pred_region
      _
    $region33: #{gpt_forward.1} parent=1 // pred_fallthru
      _
    // Predicated region
    $region34: #{gpt_forward.1} parent=1 // pred_check
      _
    $region35: #{gpt_forward.1} parent=1 // pred_check_branch
      %41 = sbr.rel (0) target = $region37
    $region36: #{gpt_forward.1} parent=1 // pred_region
      _
    $region37: #{gpt_forward.1} parent=1 // pred_fallthru
      _
    // Predicated region
    $region38: #{gpt_forward.1} parent=1 // pred_check
      _
    $region39: #{gpt_forward.1} parent=1 // pred_check_branch
      %43 = sbr.rel (0) target = $region41
    $region40: #{gpt_forward.1} parent=1 // pred_region
      _
    $region41: #{gpt_forward.1} parent=1 // pred_fallthru
      _
    // Predicated region
    $region42: #{gpt_forward.1} parent=1 // pred_check
      _
    $region43: #{gpt_forward.1} parent=1 // pred_check_branch
      %45 = sbr.rel (0) target = $region45
    $region44: #{gpt_forward.1} parent=1 // pred_region
      _
    $region45: #{gpt_forward.1} parent=1 // pred_fallthru
      _
    // Predicated region
    $region46: #{gpt_forward.1} parent=1 // pred_check
      _
    $region47: #{gpt_forward.1} parent=1 // pred_check_branch
      %47 = sbr.rel (0) target = $region49
    $region48: #{gpt_forward.1} parent=1 // pred_region
      _
    $region49: #{gpt_forward.1} parent=1 // pred_fallthru
      _
    // Predicated region
    $region50: #{gpt_forward.1} parent=1 // pred_check
      _
    $region51: #{gpt_forward.1} parent=1 // pred_check_branch
      %49 = sbr.rel (0) target = $region53
    $region52: #{gpt_forward.1} parent=1 // pred_region
      _
    $region53: #{gpt_forward.1} parent=1 // pred_fallthru
      _
    // Predicated region
    $region54: #{gpt_forward.1} parent=1 // pred_check
      _
    $region55: #{gpt_forward.1} parent=1 // pred_check_branch
      %51 = sbr.rel (0) target = $region57
    $region56: #{gpt_forward.1} parent=1 // pred_region
      _
    $region57: #{gpt_forward.1} parent=1 // pred_fallthru
      _
    // Predicated region
    $region58: #{gpt_forward.1} parent=1 // pred_check
      _
    $region59: #{gpt_forward.1} parent=1 // pred_check_branch
      %53 = sbr.rel (0) target = $region61
    $region60: #{gpt_forward.1} parent=1 // pred_region
      _
    $region61: #{gpt_forward.1} parent=1 // pred_fallthru
      _
    // Predicated region
    $region62: #{gpt_forward.1} parent=1 // pred_check
      _
    $region63: #{gpt_forward.1} parent=1 // pred_check_branch
      %55 = sbr.rel (0) target = $region65
    $region64: #{gpt_forward.1} parent=1 // pred_region
      _
    $region65: #{gpt_forward.1} parent=1 // pred_fallthru
      _
    // Predicated region
    $region66: #{gpt_forward.1} parent=1 // pred_check
      _
    $region67: #{gpt_forward.1} parent=1 // pred_check_branch
      %57 = sbr.rel (0) target = $region69
    $region68: #{gpt_forward.1} parent=1 // pred_region
      _
    $region69: #{gpt_forward.1} parent=1 // pred_fallthru
      _
    // Predicated region
    $region70: #{gpt_forward.1} parent=1 // pred_check
      _
    $region71: #{gpt_forward.1} parent=1 // pred_check_branch
      %59 = sbr.rel (0) target = $region73
    $region72: #{gpt_forward.1} parent=1 // pred_region
      _
    $region73: #{gpt_forward.1} parent=1 // pred_fallthru
      _
    %v60 = vld [vmem:[%s0] sm:$0xff]
    %v61 = vld [vmem:[%s0 + $0x8] sm:$0xff]
    %v62 = vld [vmem:[%s1] sm:$0xff]
    %v63 = vadd.f32 %v60, %v62
    %v64 = vadd.f32 %v61, %v62
    %v65 = vlaneseq
    %v66 = vshrl.u32 %v65, 7
    %v67 = vlaneseq
    %v68 = vand.u32 %v67, 127
    %vm69 = vcmp.le.s32.totalorder %v68, %v66
    %v70 = vld [vmem:[%s2] sm:$0x1]
    %v71 = vld [vmem:[%s3] sm:$0x1]
    %vm72 = vcmask 261120
    %v73 = vsel %vm72, %v63, 0.0
    %74 = vadd.xlane.f32.xlu0 %v73
    %v75 = vpop.xlane.xlu0 %74
    %v76 = vsel %vm72, %v64, 0.0
    %77 = vadd.xlane.f32.xlu0 %v76
    %v78 = vpop.xlane.xlu0 %77
    %v79 = vrcp.pop 32.0
    %v80 = vmul.f32 32.0, %v79
    %v81 = vsub.f32 1.0, %v80
    %v82 = vmul.f32 %v79, %v81
    %v83 = vadd.f32 %v79, %v82
    %vm84 = vweird.f32 %v79
    %v85 = vsel %vm84, %v79, %v83
    %v86 = vmul.f32 %v75, %v85
    %v87 = vmul.f32 %v78, %v85
    %v88 = vsub.f32 %v63, %v86
    %v89 = vsub.f32 %v64, %v87
    %v90 = vmul.f32 %v88, %v88
    %v91 = vmul.f32 %v89, %v89
    %v92 = vsel %vm72, %v90, 0.0
    %93 = vadd.xlane.f32.xlu0 %v92
    %v94 = vpop.xlane.xlu0 %93
    %v95 = vsel %vm72, %v91, 0.0
    %96 = vadd.xlane.f32.xlu0 %v95
    %v97 = vpop.xlane.xlu0 %96
    %v98 = vmul.f32 %v94, %v85
    %v99 = vmul.f32 %v97, %v85
    %v100 = vadd.f32 %v98, 1e-05
    %v101 = vadd.f32 %v99, 1e-05
    %v102 = vrsqrt.pop %v100
    %v103 = vmul.f32 %v102, %v100
    %v104 = vmul.f32 %v103, %v102
    %v105 = vmul.f32 0.5, %v104
    %v106 = vsub.f32 1.5, %v105
    %v107 = vmul.f32 %v102, %v106
    %vm108 = vweird.f32 %v100
    %vm109 = vweird.f32 %v102
    %vm110 = vmor %vm108, %vm109
    %v111 = vsel %vm110, %v102, %v107
    %v112 = vrsqrt.pop %v101
    %v113 = vmul.f32 %v112, %v101
    %v114 = vmul.f32 %v113, %v112
    %v115 = vmul.f32 0.5, %v114
    %v116 = vsub.f32 1.5, %v115
    %v117 = vmul.f32 %v112, %v116
    %vm118 = vweird.f32 %v101
    %vm119 = vweird.f32 %v112
    %vm120 = vmor %vm118, %vm119
    %v121 = vsel %vm120, %v112, %v117
    %v122 = vmul.f32 %v88, %v111
    %v123 = vmul.f32 %v89, %v121
    %v125 = vperm.slane %v70, 0
    %v127 = vmul.f32 %v125, %v122
    %v128 = vmul.f32 %v125, %v123
    %v130 = vperm.slane %v71, 0
    %v132 = vadd.f32 %v127, %v130
    %v133 = vadd.f32 %v128, %v130
    %v134 = vld [vmem:[%s4] sm:$0xff]
    %v135 = vld [vmem:[%s4 + $0x8] sm:$0xff]
    %v136 = vld [vmem:[%s4 + $0x10] sm:$0xff]
    %v137 = vld [vmem:[%s4 + $0x18] sm:$0xff]
    %v139 = vsel %vm72, %v132, 0
    %v142 = vsel %vm72, %v133, 0
    %144 = vmatpush.msra.mxu0 0.0
    %145 = vmatpush.msra.mxu0 0.0
    %146 = vmatpush.msra.mxu0 0.0
    %147 = vmatpush.msra.mxu0 0.0
    %148 = vmatpush.msra.mxu0 0.0
    %149 = vmatpush.msra.mxu0 0.0
    %150 = vmatpush.msra.mxu0 0.0
    %151 = vmatpush.msra.mxu0 0.0
    %152 = vmatpush.msra.mxu0 0.0
    %153 = vmatpush.msra.mxu0 0.0
    %154 = vmatpush.msra.mxu0 0.0
    %155 = vmatpush.msra.mxu0 0.0
    %156 = vmatpush.msra.mxu0 %v137
    %157 = vmatpush.msra.mxu0 %v136
    %158 = vmatpush.msra.mxu0 %v135
    %159 = vmatpush.msra.mxu0 %v134
    %160 = vmatmul.f32.gmra.mxu0 %v139
    %v161 = vpop.f32.mrf.mxu0
    %v162 = vadd.f32 0.0, %v161
    %163 = vmatmul.f32.gmra.mxu0 %v142
    %v164 = vpop.f32.mrf.mxu0
    %v165 = vadd.f32 0.0, %v164
    %166 = vdwg.mxu0
    %v167 = vmul.f32 %v162, 0.35355338
    %v168 = vmul.f32 %v165, 0.35355338
    %v169 = vld [vmem:[%s5] sm:$0xff]
    %v170 = vld [vmem:[%s5 + $0x8] sm:$0xff]
    %v171 = vld [vmem:[%s5 + $0x10] sm:$0xff]
    %v172 = vld [vmem:[%s5 + $0x18] sm:$0xff]
    %173 = vmatpush.msra.mxu0 0.0
    %174 = vmatpush.msra.mxu0 0.0
    %175 = vmatpush.msra.mxu0 0.0
    %176 = vmatpush.msra.mxu0 0.0
    %177 = vmatpush.msra.mxu0 0.0
    %178 = vmatpush.msra.mxu0 0.0
    %179 = vmatpush.msra.mxu0 0.0
    %180 = vmatpush.msra.mxu0 0.0
    %181 = vmatpush.msra.mxu0 0.0
    %182 = vmatpush.msra.mxu0 0.0
    %183 = vmatpush.msra.mxu0 0.0
    %184 = vmatpush.msra.mxu0 0.0
    %185 = vmatpush.msra.mxu0 %v172
    %186 = vmatpush.msra.mxu0 %v171
    %187 = vmatpush.msra.mxu0 %v170
    %188 = vmatpush.msra.mxu0 %v169
    %189 = vmatmul.f32.gmra.mxu0 %v139
    %v190 = vpop.f32.mrf.mxu0
    %v191 = vadd.f32 0.0, %v190
    %192 = vmatmul.f32.gmra.mxu0 %v142
    %v193 = vpop.f32.mrf.mxu0
    %v194 = vadd.f32 0.0, %v193
    %195 = vdwg.mxu0
    %v196 = vld [vmem:[%s6] sm:$0xff]
    %v197 = vld [vmem:[%s6 + $0x8] sm:$0xff]
    %v198 = vld [vmem:[%s6 + $0x10] sm:$0xff]
    %v199 = vld [vmem:[%s6 + $0x18] sm:$0xff]
    %200 = vmatpush.msra.mxu0 0.0
    %201 = vmatpush.msra.mxu0 0.0
    %202 = vmatpush.msra.mxu0 0.0
    %203 = vmatpush.msra.mxu0 0.0
    %204 = vmatpush.msra.mxu0 0.0
    %205 = vmatpush.msra.mxu0 0.0
    %206 = vmatpush.msra.mxu0 0.0
    %207 = vmatpush.msra.mxu0 0.0
    %208 = vmatpush.msra.mxu0 0.0
    %209 = vmatpush.msra.mxu0 0.0
    %210 = vmatpush.msra.mxu0 0.0
    %211 = vmatpush.msra.mxu0 0.0
    %212 = vmatpush.msra.mxu0 %v199
    %213 = vmatpush.msra.mxu0 %v198
    %214 = vmatpush.msra.mxu0 %v197
    %215 = vmatpush.msra.mxu0 %v196
    %216 = vmatmul.f32.gmra.mxu0 %v139
    %v217 = vpop.f32.mrf.mxu0
    %v218 = vadd.f32 0.0, %v217
    %219 = vmatmul.f32.gmra.mxu0 %v142
    %v220 = vpop.f32.mrf.mxu0
    %v221 = vadd.f32 0.0, %v220
    %222 = vdwg.mxu0
    %v223 = vld [vmem:[%s7] sm:$0xff]
    %v224 = vld [vmem:[%s7 + $0x8] sm:$0xff]
    %v225 = vld [vmem:[%s7 + $0x10] sm:$0xff]
    %v226 = vld [vmem:[%s7 + $0x18] sm:$0xff]
    %vm227 = vcmask 64512
    %v229 = vsel %vm227, %v167, 0
    %v232 = vsel %vm227, %v191, 0
    %234 = vmatpush.xpose.msra.mxu0 0.0
    %235 = vmatpush.xpose.msra.mxu0 0.0
    %236 = vmatpush.xpose.msra.mxu0 0.0
    %237 = vmatpush.xpose.msra.mxu0 0.0
    %238 = vmatpush.xpose.msra.mxu0 0.0
    %239 = vmatpush.xpose.msra.mxu0 0.0
    %240 = vmatpush.xpose.msra.mxu0 0.0
    %241 = vmatpush.xpose.msra.mxu0 0.0
    %242 = vmatpush.xpose.msra.mxu0 0.0
    %243 = vmatpush.xpose.msra.mxu0 0.0
    %244 = vmatpush.xpose.msra.mxu0 0.0
    %245 = vmatpush.xpose.msra.mxu0 0.0
    %246 = vmatpush.xpose.msra.mxu0 0.0
    %247 = vmatpush.xpose.msra.mxu0 0.0
    %248 = vmatpush.xpose.msra.mxu0 0.0
    %249 = vmatpush.xpose.msra.mxu0 %v232
    %250 = vmatmul.f32.gmra.mxu0 %v229
    %v251 = vpop.f32.mrf.mxu0
    %v252 = vadd.f32 0.0, %v251
    %253 = vdwg.mxu0
    %v255 = vsel %vm227, %v168, 0
    %v258 = vsel %vm227, %v194, 0
    %260 = vmatpush.xpose.msra.mxu0 0.0
    %261 = vmatpush.xpose.msra.mxu0 0.0
    %262 = vmatpush.xpose.msra.mxu0 0.0
    %263 = vmatpush.xpose.msra.mxu0 0.0
    %264 = vmatpush.xpose.msra.mxu0 0.0
    %265 = vmatpush.xpose.msra.mxu0 0.0
    %266 = vmatpush.xpose.msra.mxu0 0.0
    %267 = vmatpush.xpose.msra.mxu0 0.0
    %268 = vmatpush.xpose.msra.mxu0 0.0
    %269 = vmatpush.xpose.msra.mxu0 0.0
    %270 = vmatpush.xpose.msra.mxu0 0.0
    %271 = vmatpush.xpose.msra.mxu0 0.0
    %272 = vmatpush.xpose.msra.mxu0 0.0
    %273 = vmatpush.xpose.msra.mxu0 0.0
    %274 = vmatpush.xpose.msra.mxu0 0.0
    %275 = vmatpush.xpose.msra.mxu0 %v258
    %276 = vmatmul.f32.gmra.mxu0 %v255
    %v277 = vpop.f32.mrf.mxu0
    %v278 = vadd.f32 0.0, %v277
    %279 = vdwg.mxu0
    %v280 = vsel %vm69, 1, 0
    %vm281 = vcmp.eq.s32.totalorder %v280, 1
    %v282 = vsel %vm281, %v252, -1e+30
    %v283 = vsel %vm281, %v278, -1e+30
    %v284 = vsel %vm227, %v282, -inf
    %285 = vmax.xlane.f32.xlu0 %v284
    %v286 = vpop.xlane.xlu0 %285
    %v287 = vsel %vm227, %v283, -inf
    %288 = vmax.xlane.f32.xlu0 %v287
    %v289 = vpop.xlane.xlu0 %288
    %v290 = vsub.f32 %v282, %v286
    %v291 = vsub.f32 %v283, %v289
    %v292 = vmul.f32 %v290, 1.442695
    %v293 = vpow.pop %v292
    %v294 = vmul.f32 %v291, 1.442695
    %v295 = vpow.pop %v294
    %v296 = vsel %vm227, %v293, 0.0
    %297 = vadd.xlane.f32.xlu0 %v296
    %v298 = vpop.xlane.xlu0 %297
    %v299 = vsel %vm227, %v295, 0.0
    %300 = vadd.xlane.f32.xlu0 %v299
    %v301 = vpop.xlane.xlu0 %300
    %v302 = vrcp.pop %v298
    %v303 = vrcp.pop %v301
    %v304 = vmul.f32 %v293, %v302
    %v305 = vmul.f32 %v295, %v303
    %v307 = vsel %vm227, %v304, 0
    %309 = vmatpush.msra.mxu0 0.0
    %310 = vmatpush.msra.mxu0 0.0
    %311 = vmatpush.msra.mxu0 0.0
    %312 = vmatpush.msra.mxu0 0.0
    %313 = vmatpush.msra.mxu0 0.0
    %314 = vmatpush.msra.mxu0 0.0
    %315 = vmatpush.msra.mxu0 0.0
    %316 = vmatpush.msra.mxu0 0.0
    %317 = vmatpush.msra.mxu0 0.0
    %318 = vmatpush.msra.mxu0 0.0
    %319 = vmatpush.msra.mxu0 0.0
    %320 = vmatpush.msra.mxu0 0.0
    %321 = vmatpush.msra.mxu0 0.0
    %322 = vmatpush.msra.mxu0 0.0
    %323 = vmatpush.msra.mxu0 0.0
    %324 = vmatpush.msra.mxu0 %v218
    %325 = vmatmul.f32.gmra.mxu0 %v307
    %v326 = vpop.f32.mrf.mxu0
    %v327 = vadd.f32 0.0, %v326
    %328 = vdwg.mxu0
    %v330 = vsel %vm227, %v305, 0
    %332 = vmatpush.msra.mxu0 0.0
    %333 = vmatpush.msra.mxu0 0.0
    %334 = vmatpush.msra.mxu0 0.0
    %335 = vmatpush.msra.mxu0 0.0
    %336 = vmatpush.msra.mxu0 0.0
    %337 = vmatpush.msra.mxu0 0.0
    %338 = vmatpush.msra.mxu0 0.0
    %339 = vmatpush.msra.mxu0 0.0
    %340 = vmatpush.msra.mxu0 0.0
    %341 = vmatpush.msra.mxu0 0.0
    %342 = vmatpush.msra.mxu0 0.0
    %343 = vmatpush.msra.mxu0 0.0
    %344 = vmatpush.msra.mxu0 0.0
    %345 = vmatpush.msra.mxu0 0.0
    %346 = vmatpush.msra.mxu0 0.0
    %347 = vmatpush.msra.mxu0 %v221
    %348 = vmatmul.f32.gmra.mxu0 %v330
    %v349 = vpop.f32.mrf.mxu0
    %v350 = vadd.f32 0.0, %v349
    %351 = vdwg.mxu0
    %352 = vrot.lane.b32.xlu0 %v167, 120
    %v353 = vpop.permute.xlu0 %352
    %354 = vrot.lane.b32.xlu0 %v191, 120
    %v355 = vpop.permute.xlu0 %354
    %v356 = vsel %vm227, %v353, 0
    %v358 = vsel %vm227, %v355, 0
    %360 = vmatpush.xpose.msra.mxu0 0.0
    %361 = vmatpush.xpose.msra.mxu0 0.0
    %362 = vmatpush.xpose.msra.mxu0 0.0
    %363 = vmatpush.xpose.msra.mxu0 0.0
    %364 = vmatpush.xpose.msra.mxu0 0.0
    %365 = vmatpush.xpose.msra.mxu0 0.0
    %366 = vmatpush.xpose.msra.mxu0 0.0
    %367 = vmatpush.xpose.msra.mxu0 0.0
    %368 = vmatpush.xpose.msra.mxu0 0.0
    %369 = vmatpush.xpose.msra.mxu0 0.0
    %370 = vmatpush.xpose.msra.mxu0 0.0
    %371 = vmatpush.xpose.msra.mxu0 0.0
    %372 = vmatpush.xpose.msra.mxu0 0.0
    %373 = vmatpush.xpose.msra.mxu0 0.0
    %374 = vmatpush.xpose.msra.mxu0 0.0
    %375 = vmatpush.xpose.msra.mxu0 %v358
    %376 = vmatmul.f32.gmra.mxu0 %v356
    %v377 = vpop.f32.mrf.mxu0
    %v378 = vadd.f32 0.0, %v377
    %379 = vdwg.mxu0
    %380 = vrot.lane.b32.xlu0 %v168, 120
    %v381 = vpop.permute.xlu0 %380
    %382 = vrot.lane.b32.xlu0 %v194, 120
    %v383 = vpop.permute.xlu0 %382
    %v384 = vsel %vm227, %v381, 0
    %v386 = vsel %vm227, %v383, 0
    %388 = vmatpush.xpose.msra.mxu0 0.0
    %389 = vmatpush.xpose.msra.mxu0 0.0
    %390 = vmatpush.xpose.msra.mxu0 0.0
    %391 = vmatpush.xpose.msra.mxu0 0.0
    %392 = vmatpush.xpose.msra.mxu0 0.0
    %393 = vmatpush.xpose.msra.mxu0 0.0
    %394 = vmatpush.xpose.msra.mxu0 0.0
    %395 = vmatpush.xpose.msra.mxu0 0.0
    %396 = vmatpush.xpose.msra.mxu0 0.0
    %397 = vmatpush.xpose.msra.mxu0 0.0
    %398 = vmatpush.xpose.msra.mxu0 0.0
    %399 = vmatpush.xpose.msra.mxu0 0.0
    %400 = vmatpush.xpose.msra.mxu0 0.0
    %401 = vmatpush.xpose.msra.mxu0 0.0
    %402 = vmatpush.xpose.msra.mxu0 0.0
    %403 = vmatpush.xpose.msra.mxu0 %v386
    %404 = vmatmul.f32.gmra.mxu0 %v384
    %v405 = vpop.f32.mrf.mxu0
    %v406 = vadd.f32 0.0, %v405
    %407 = vdwg.mxu0
    %v408 = vsel %vm281, %v378, -1e+30
    %v409 = vsel %vm281, %v406, -1e+30
    %v410 = vsel %vm227, %v408, -inf
    %411 = vmax.xlane.f32.xlu0 %v410
    %v412 = vpop.xlane.xlu0 %411
    %v413 = vsel %vm227, %v409, -inf
    %414 = vmax.xlane.f32.xlu0 %v413
    %v415 = vpop.xlane.xlu0 %414
    %v416 = vsub.f32 %v408, %v412
    %v417 = vsub.f32 %v409, %v415
    %v418 = vmul.f32 %v416, 1.442695
    %v419 = vpow.pop %v418
    %v420 = vmul.f32 %v417, 1.442695
    %v421 = vpow.pop %v420
    %v422 = vsel %vm227, %v419, 0.0
    %423 = vadd.xlane.f32.xlu0 %v422
    %v424 = vpop.xlane.xlu0 %423
    %v425 = vsel %vm227, %v421, 0.0
    %426 = vadd.xlane.f32.xlu0 %v425
    %v427 = vpop.xlane.xlu0 %426
    %v428 = vrcp.pop %v424
    %v429 = vrcp.pop %v427
    %v430 = vmul.f32 %v419, %v428
    %v431 = vmul.f32 %v421, %v429
    %433 = vrot.lane.b32.xlu0 %v218, 120
    %v434 = vpop.permute.xlu0 %433
    %v437 = vsel %vm227, %v430, 0
    %439 = vmatpush.msra.mxu0 0.0
    %440 = vmatpush.msra.mxu0 0.0
    %441 = vmatpush.msra.mxu0 0.0
    %442 = vmatpush.msra.mxu0 0.0
    %443 = vmatpush.msra.mxu0 0.0
    %444 = vmatpush.msra.mxu0 0.0
    %445 = vmatpush.msra.mxu0 0.0
    %446 = vmatpush.msra.mxu0 0.0
    %447 = vmatpush.msra.mxu0 0.0
    %448 = vmatpush.msra.mxu0 0.0
    %449 = vmatpush.msra.mxu0 0.0
    %450 = vmatpush.msra.mxu0 0.0
    %451 = vmatpush.msra.mxu0 0.0
    %452 = vmatpush.msra.mxu0 0.0
    %453 = vmatpush.msra.mxu0 0.0
    %454 = vmatpush.msra.mxu0 %v434
    %455 = vmatmul.f32.gmra.mxu0 %v437
    %v456 = vpop.f32.mrf.mxu0
    %v457 = vadd.f32 0.0, %v456
    %458 = vdwg.mxu0
    %460 = vrot.lane.b32.xlu0 %v221, 120
    %v461 = vpop.permute.xlu0 %460
    %v464 = vsel %vm227, %v431, 0
    %466 = vmatpush.msra.mxu0 0.0
    %467 = vmatpush.msra.mxu0 0.0
    %468 = vmatpush.msra.mxu0 0.0
    %469 = vmatpush.msra.mxu0 0.0
    %470 = vmatpush.msra.mxu0 0.0
    %471 = vmatpush.msra.mxu0 0.0
    %472 = vmatpush.msra.mxu0 0.0
    %473 = vmatpush.msra.mxu0 0.0
    %474 = vmatpush.msra.mxu0 0.0
    %475 = vmatpush.msra.mxu0 0.0
    %476 = vmatpush.msra.mxu0 0.0
    %477 = vmatpush.msra.mxu0 0.0
    %478 = vmatpush.msra.mxu0 0.0
    %479 = vmatpush.msra.mxu0 0.0
    %480 = vmatpush.msra.mxu0 0.0
    %481 = vmatpush.msra.mxu0 %v461
    %482 = vmatmul.f32.gmra.mxu0 %v464
    %v483 = vpop.f32.mrf.mxu0
    %v484 = vadd.f32 0.0, %v483
    %485 = vdwg.mxu0
    %v487 = vsel %vm227, %v457, 0
    %v490 = vsel %vm227, %v484, 0
    %492 = vmatpush.msra.mxu0 0.0
    %493 = vmatpush.msra.mxu0 0.0
    %494 = vmatpush.msra.mxu0 0.0
    %495 = vmatpush.msra.mxu0 0.0
    %496 = vmatpush.msra.mxu0 0.0
    %497 = vmatpush.msra.mxu0 0.0
    %498 = vmatpush.msra.mxu0 0.0
    %499 = vmatpush.msra.mxu0 0.0
    %500 = vmatpush.msra.mxu0 0.0
    %501 = vmatpush.msra.mxu0 0.0
    %502 = vmatpush.msra.mxu0 0.0
    %503 = vmatpush.msra.mxu0 0.0
    %504 = vmatpush.msra.mxu0 0.0
    %505 = vmatpush.msra.mxu0 0.0
    %506 = vmatpush.msra.mxu0 0.0
    %507 = vmatpush.msra.mxu0 %v224
    %508 = vmatmul.f32.gmra.mxu0 %v487
    %v509 = vpop.f32.mrf.mxu0
    %v510 = vadd.f32 0.0, %v509
    %511 = vmatmul.f32.gmra.mxu0 %v490
    %v512 = vpop.f32.mrf.mxu0
    %v513 = vadd.f32 0.0, %v512
    %514 = vdwg.mxu0
    %v516 = vsel %vm227, %v327, 0
    %v519 = vsel %vm227, %v350, 0
    %521 = vmatpush.msra.mxu0 0.0
    %522 = vmatpush.msra.mxu0 0.0
    %523 = vmatpush.msra.mxu0 0.0
    %524 = vmatpush.msra.mxu0 0.0
    %525 = vmatpush.msra.mxu0 0.0
    %526 = vmatpush.msra.mxu0 0.0
    %527 = vmatpush.msra.mxu0 0.0
    %528 = vmatpush.msra.mxu0 0.0
    %529 = vmatpush.msra.mxu0 0.0
    %530 = vmatpush.msra.mxu0 0.0
    %531 = vmatpush.msra.mxu0 0.0
    %532 = vmatpush.msra.mxu0 0.0
    %533 = vmatpush.msra.mxu0 0.0
    %534 = vmatpush.msra.mxu0 0.0
    %535 = vmatpush.msra.mxu0 0.0
    %536 = vmatpush.msra.mxu0 %v223
    %537 = vmatmul.f32.gmra.mxu0 %v516
    %v538 = vpop.f32.mrf.mxu0
    %v539 = vadd.f32 %v510, %v538
    %540 = vmatmul.f32.gmra.mxu0 %v519
    %v541 = vpop.f32.mrf.mxu0
    %v542 = vadd.f32 %v513, %v541
    %543 = vdwg.mxu0
    %544 = vrot.lane.b32.xlu0 %v167, 112
    %v545 = vpop.permute.xlu0 %544
    %546 = vrot.lane.b32.xlu0 %v191, 112
    %v547 = vpop.permute.xlu0 %546
    %v548 = vsel %vm227, %v545, 0
    %v550 = vsel %vm227, %v547, 0
    %552 = vmatpush.xpose.msra.mxu0 0.0
    %553 = vmatpush.xpose.msra.mxu0 0.0
    %554 = vmatpush.xpose.msra.mxu0 0.0
    %555 = vmatpush.xpose.msra.mxu0 0.0
    %556 = vmatpush.xpose.msra.mxu0 0.0
    %557 = vmatpush.xpose.msra.mxu0 0.0
    %558 = vmatpush.xpose.msra.mxu0 0.0
    %559 = vmatpush.xpose.msra.mxu0 0.0
    %560 = vmatpush.xpose.msra.mxu0 0.0
    %561 = vmatpush.xpose.msra.mxu0 0.0
    %562 = vmatpush.xpose.msra.mxu0 0.0
    %563 = vmatpush.xpose.msra.mxu0 0.0
    %564 = vmatpush.xpose.msra.mxu0 0.0
    %565 = vmatpush.xpose.msra.mxu0 0.0
    %566 = vmatpush.xpose.msra.mxu0 0.0
    %567 = vmatpush.xpose.msra.mxu0 %v550
    %568 = vmatmul.f32.gmra.mxu0 %v548
    %v569 = vpop.f32.mrf.mxu0
    %v570 = vadd.f32 0.0, %v569
    %571 = vdwg.mxu0
    %572 = vrot.lane.b32.xlu0 %v168, 112
    %v573 = vpop.permute.xlu0 %572
    %574 = vrot.lane.b32.xlu0 %v194, 112
    %v575 = vpop.permute.xlu0 %574
    %v576 = vsel %vm227, %v573, 0
    %v578 = vsel %vm227, %v575, 0
    %580 = vmatpush.xpose.msra.mxu0 0.0
    %581 = vmatpush.xpose.msra.mxu0 0.0
    %582 = vmatpush.xpose.msra.mxu0 0.0
    %583 = vmatpush.xpose.msra.mxu0 0.0
    %584 = vmatpush.xpose.msra.mxu0 0.0
    %585 = vmatpush.xpose.msra.mxu0 0.0
    %586 = vmatpush.xpose.msra.mxu0 0.0
    %587 = vmatpush.xpose.msra.mxu0 0.0
    %588 = vmatpush.xpose.msra.mxu0 0.0
    %589 = vmatpush.xpose.msra.mxu0 0.0
    %590 = vmatpush.xpose.msra.mxu0 0.0
    %591 = vmatpush.xpose.msra.mxu0 0.0
    %592 = vmatpush.xpose.msra.mxu0 0.0
    %593 = vmatpush.xpose.msra.mxu0 0.0
    %594 = vmatpush.xpose.msra.mxu0 0.0
    %595 = vmatpush.xpose.msra.mxu0 %v578
    %596 = vmatmul.f32.gmra.mxu0 %v576
    %v597 = vpop.f32.mrf.mxu0
    %v598 = vadd.f32 0.0, %v597
    %599 = vdwg.mxu0
    %v600 = vsel %vm281, %v570, -1e+30
    %v601 = vsel %vm281, %v598, -1e+30
    %v602 = vsel %vm227, %v600, -inf
    %603 = vmax.xlane.f32.xlu0 %v602
    %v604 = vpop.xlane.xlu0 %603
    %v605 = vsel %vm227, %v601, -inf
    %606 = vmax.xlane.f32.xlu0 %v605
    %v607 = vpop.xlane.xlu0 %606
    %v608 = vsub.f32 %v600, %v604
    %v609 = vsub.f32 %v601, %v607
    %v610 = vmul.f32 %v608, 1.442695
    %v611 = vpow.pop %v610
    %v612 = vmul.f32 %v609, 1.442695
    %v613 = vpow.pop %v612
    %v614 = vsel %vm227, %v611, 0.0
    %615 = vadd.xlane.f32.xlu0 %v614
    %v616 = vpop.xlane.xlu0 %615
    %v617 = vsel %vm227, %v613, 0.0
    %618 = vadd.xlane.f32.xlu0 %v617
    %v619 = vpop.xlane.xlu0 %618
    %v620 = vrcp.pop %v616
    %v621 = vrcp.pop %v619
    %v622 = vmul.f32 %v611, %v620
    %v623 = vmul.f32 %v613, %v621
    %624 = vrot.lane.b32.xlu0 %v218, 112
    %v625 = vpop.permute.xlu0 %624
    %v628 = vsel %vm227, %v622, 0
    %630 = vmatpush.msra.mxu0 0.0
    %631 = vmatpush.msra.mxu0 0.0
    %632 = vmatpush.msra.mxu0 0.0
    %633 = vmatpush.msra.mxu0 0.0
    %634 = vmatpush.msra.mxu0 0.0
    %635 = vmatpush.msra.mxu0 0.0
    %636 = vmatpush.msra.mxu0 0.0
    %637 = vmatpush.msra.mxu0 0.0
    %638 = vmatpush.msra.mxu0 0.0
    %639 = vmatpush.msra.mxu0 0.0
    %640 = vmatpush.msra.mxu0 0.0
    %641 = vmatpush.msra.mxu0 0.0
    %642 = vmatpush.msra.mxu0 0.0
    %643 = vmatpush.msra.mxu0 0.0
    %644 = vmatpush.msra.mxu0 0.0
    %645 = vmatpush.msra.mxu0 %v625
    %646 = vmatmul.f32.gmra.mxu0 %v628
    %v647 = vpop.f32.mrf.mxu0
    %v648 = vadd.f32 0.0, %v647
    %649 = vdwg.mxu0
    %650 = vrot.lane.b32.xlu0 %v221, 112
    %v651 = vpop.permute.xlu0 %650
    %v654 = vsel %vm227, %v623, 0
    %656 = vmatpush.msra.mxu0 0.0
    %657 = vmatpush.msra.mxu0 0.0
    %658 = vmatpush.msra.mxu0 0.0
    %659 = vmatpush.msra.mxu0 0.0
    %660 = vmatpush.msra.mxu0 0.0
    %661 = vmatpush.msra.mxu0 0.0
    %662 = vmatpush.msra.mxu0 0.0
    %663 = vmatpush.msra.mxu0 0.0
    %664 = vmatpush.msra.mxu0 0.0
    %665 = vmatpush.msra.mxu0 0.0
    %666 = vmatpush.msra.mxu0 0.0
    %667 = vmatpush.msra.mxu0 0.0
    %668 = vmatpush.msra.mxu0 0.0
    %669 = vmatpush.msra.mxu0 0.0
    %670 = vmatpush.msra.mxu0 0.0
    %671 = vmatpush.msra.mxu0 %v651
    %672 = vmatmul.f32.gmra.mxu0 %v654
    %v673 = vpop.f32.mrf.mxu0
    %v674 = vadd.f32 0.0, %v673
    %675 = vdwg.mxu0
    %v677 = vsel %vm227, %v648, 0
    %v680 = vsel %vm227, %v674, 0
    %682 = vmatpush.msra.mxu0 0.0
    %683 = vmatpush.msra.mxu0 0.0
    %684 = vmatpush.msra.mxu0 0.0
    %685 = vmatpush.msra.mxu0 0.0
    %686 = vmatpush.msra.mxu0 0.0
    %687 = vmatpush.msra.mxu0 0.0
    %688 = vmatpush.msra.mxu0 0.0
    %689 = vmatpush.msra.mxu0 0.0
    %690 = vmatpush.msra.mxu0 0.0
    %691 = vmatpush.msra.mxu0 0.0
    %692 = vmatpush.msra.mxu0 0.0
    %693 = vmatpush.msra.mxu0 0.0
    %694 = vmatpush.msra.mxu0 0.0
    %695 = vmatpush.msra.mxu0 0.0
    %696 = vmatpush.msra.mxu0 0.0
    %697 = vmatpush.msra.mxu0 %v225
    %698 = vmatmul.f32.gmra.mxu0 %v677
    %v699 = vpop.f32.mrf.mxu0
    %v700 = vadd.f32 0.0, %v699
    %701 = vmatmul.f32.gmra.mxu0 %v680
    %v702 = vpop.f32.mrf.mxu0
    %v703 = vadd.f32 0.0, %v702
    %704 = vdwg.mxu0
    %v705 = vadd.f32 %v539, %v700
    %v706 = vadd.f32 %v542, %v703
    %707 = vrot.lane.b32.xlu0 %v167, 104
    %v708 = vpop.permute.xlu0 %707
    %709 = vrot.lane.b32.xlu0 %v191, 104
    %v710 = vpop.permute.xlu0 %709
    %v711 = vsel %vm227, %v708, 0
    %v713 = vsel %vm227, %v710, 0
    %715 = vmatpush.xpose.msra.mxu0 0.0
    %716 = vmatpush.xpose.msra.mxu0 0.0
    %717 = vmatpush.xpose.msra.mxu0 0.0
    %718 = vmatpush.xpose.msra.mxu0 0.0
    %719 = vmatpush.xpose.msra.mxu0 0.0
    %720 = vmatpush.xpose.msra.mxu0 0.0
    %721 = vmatpush.xpose.msra.mxu0 0.0
    %722 = vmatpush.xpose.msra.mxu0 0.0
    %723 = vmatpush.xpose.msra.mxu0 0.0
    %724 = vmatpush.xpose.msra.mxu0 0.0
    %725 = vmatpush.xpose.msra.mxu0 0.0
    %726 = vmatpush.xpose.msra.mxu0 0.0
    %727 = vmatpush.xpose.msra.mxu0 0.0
    %728 = vmatpush.xpose.msra.mxu0 0.0
    %729 = vmatpush.xpose.msra.mxu0 0.0
    %730 = vmatpush.xpose.msra.mxu0 %v713
    %731 = vmatmul.f32.gmra.mxu0 %v711
    %v732 = vpop.f32.mrf.mxu0
    %v733 = vadd.f32 0.0, %v732
    %734 = vdwg.mxu0
    %735 = vrot.lane.b32.xlu0 %v168, 104
    %v736 = vpop.permute.xlu0 %735
    %737 = vrot.lane.b32.xlu0 %v194, 104
    %v738 = vpop.permute.xlu0 %737
    %v739 = vsel %vm227, %v736, 0
    %v741 = vsel %vm227, %v738, 0
    %743 = vmatpush.xpose.msra.mxu0 0.0
    %744 = vmatpush.xpose.msra.mxu0 0.0
    %745 = vmatpush.xpose.msra.mxu0 0.0
    %746 = vmatpush.xpose.msra.mxu0 0.0
    %747 = vmatpush.xpose.msra.mxu0 0.0
    %748 = vmatpush.xpose.msra.mxu0 0.0
    %749 = vmatpush.xpose.msra.mxu0 0.0
    %750 = vmatpush.xpose.msra.mxu0 0.0
    %751 = vmatpush.xpose.msra.mxu0 0.0
    %752 = vmatpush.xpose.msra.mxu0 0.0
    %753 = vmatpush.xpose.msra.mxu0 0.0
    %754 = vmatpush.xpose.msra.mxu0 0.0
    %755 = vmatpush.xpose.msra.mxu0 0.0
    %756 = vmatpush.xpose.msra.mxu0 0.0
    %757 = vmatpush.xpose.msra.mxu0 0.0
    %758 = vmatpush.xpose.msra.mxu0 %v741
    %759 = vmatmul.f32.gmra.mxu0 %v739
    %v760 = vpop.f32.mrf.mxu0
    %v761 = vadd.f32 0.0, %v760
    %762 = vdwg.mxu0
    %v763 = vsel %vm281, %v733, -1e+30
    %v764 = vsel %vm281, %v761, -1e+30
    %v765 = vsel %vm227, %v763, -inf
    %766 = vmax.xlane.f32.xlu0 %v765
    %v767 = vpop.xlane.xlu0 %766
    %v768 = vsel %vm227, %v764, -inf
    %769 = vmax.xlane.f32.xlu0 %v768
    %v770 = vpop.xlane.xlu0 %769
    %v771 = vsub.f32 %v763, %v767
    %v772 = vsub.f32 %v764, %v770
    %v773 = vmul.f32 %v771, 1.442695
    %v774 = vpow.pop %v773
    %v775 = vmul.f32 %v772, 1.442695
    %v776 = vpow.pop %v775
    %v777 = vsel %vm227, %v774, 0.0
    %778 = vadd.xlane.f32.xlu0 %v777
    %v779 = vpop.xlane.xlu0 %778
    %v780 = vsel %vm227, %v776, 0.0
    %781 = vadd.xlane.f32.xlu0 %v780
    %v782 = vpop.xlane.xlu0 %781
    %v783 = vrcp.pop %v779
    %v784 = vrcp.pop %v782
    %v785 = vmul.f32 %v774, %v783
    %v786 = vmul.f32 %v776, %v784
    %787 = vrot.lane.b32.xlu0 %v218, 104
    %v788 = vpop.permute.xlu0 %787
    %v791 = vsel %vm227, %v785, 0
    %793 = vmatpush.msra.mxu0 0.0
    %794 = vmatpush.msra.mxu0 0.0
    %795 = vmatpush.msra.mxu0 0.0
    %796 = vmatpush.msra.mxu0 0.0
    %797 = vmatpush.msra.mxu0 0.0
    %798 = vmatpush.msra.mxu0 0.0
    %799 = vmatpush.msra.mxu0 0.0
    %800 = vmatpush.msra.mxu0 0.0
    %801 = vmatpush.msra.mxu0 0.0
    %802 = vmatpush.msra.mxu0 0.0
    %803 = vmatpush.msra.mxu0 0.0
    %804 = vmatpush.msra.mxu0 0.0
    %805 = vmatpush.msra.mxu0 0.0
    %806 = vmatpush.msra.mxu0 0.0
    %807 = vmatpush.msra.mxu0 0.0
    %808 = vmatpush.msra.mxu0 %v788
    %809 = vmatmul.f32.gmra.mxu0 %v791
    %v810 = vpop.f32.mrf.mxu0
    %v811 = vadd.f32 0.0, %v810
    %812 = vdwg.mxu0
    %813 = vrot.lane.b32.xlu0 %v221, 104
    %v814 = vpop.permute.xlu0 %813
    %v817 = vsel %vm227, %v786, 0
    %819 = vmatpush.msra.mxu0 0.0
    %820 = vmatpush.msra.mxu0 0.0
    %821 = vmatpush.msra.mxu0 0.0
    %822 = vmatpush.msra.mxu0 0.0
    %823 = vmatpush.msra.mxu0 0.0
    %824 = vmatpush.msra.mxu0 0.0
    %825 = vmatpush.msra.mxu0 0.0
    %826 = vmatpush.msra.mxu0 0.0
    %827 = vmatpush.msra.mxu0 0.0
    %828 = vmatpush.msra.mxu0 0.0
    %829 = vmatpush.msra.mxu0 0.0
    %830 = vmatpush.msra.mxu0 0.0
    %831 = vmatpush.msra.mxu0 0.0
    %832 = vmatpush.msra.mxu0 0.0
    %833 = vmatpush.msra.mxu0 0.0
    %834 = vmatpush.msra.mxu0 %v814
    %835 = vmatmul.f32.gmra.mxu0 %v817
    %v836 = vpop.f32.mrf.mxu0
    %v837 = vadd.f32 0.0, %v836
    %838 = vdwg.mxu0
    %v840 = vsel %vm227, %v811, 0
    %v843 = vsel %vm227, %v837, 0
    %845 = vmatpush.msra.mxu0 0.0
    %846 = vmatpush.msra.mxu0 0.0
    %847 = vmatpush.msra.mxu0 0.0
    %848 = vmatpush.msra.mxu0 0.0
    %849 = vmatpush.msra.mxu0 0.0
    %850 = vmatpush.msra.mxu0 0.0
    %851 = vmatpush.msra.mxu0 0.0
    %852 = vmatpush.msra.mxu0 0.0
    %853 = vmatpush.msra.mxu0 0.0
    %854 = vmatpush.msra.mxu0 0.0
    %855 = vmatpush.msra.mxu0 0.0
    %856 = vmatpush.msra.mxu0 0.0
    %857 = vmatpush.msra.mxu0 0.0
    %858 = vmatpush.msra.mxu0 0.0
    %859 = vmatpush.msra.mxu0 0.0
    %860 = vmatpush.msra.mxu0 %v226
    %861 = vmatmul.f32.gmra.mxu0 %v840
    %v862 = vpop.f32.mrf.mxu0
    %v863 = vadd.f32 0.0, %v862
    %864 = vmatmul.f32.gmra.mxu0 %v843
    %v865 = vpop.f32.mrf.mxu0
    %v866 = vadd.f32 0.0, %v865
    %867 = vdwg.mxu0
    %v868 = vadd.f32 %v705, %v863
    %v869 = vadd.f32 %v706, %v866
    %v870 = vadd.f32 %v63, %v868
    %v871 = vadd.f32 %v64, %v869
    %v872 = vld [vmem:[%s8] sm:$0x1]
    %v874 = vperm.slane %v872, 0
    %v876 = vadd.f32 %v870, %v874
    %v877 = vadd.f32 %v871, %v874
    %v878 = vld [vmem:[%s9] sm:$0x1]
    %v879 = vld [vmem:[%s10] sm:$0x1]
    %v880 = vsel %vm72, %v876, 0.0
    %881 = vadd.xlane.f32.xlu0 %v880
    %v882 = vpop.xlane.xlu0 %881
    %v883 = vsel %vm72, %v877, 0.0
    %884 = vadd.xlane.f32.xlu0 %v883
    %v885 = vpop.xlane.xlu0 %884
    %v886 = vmul.f32 %v882, %v85
    %v887 = vmul.f32 %v885, %v85
    %v888 = vsub.f32 %v876, %v886
    %v889 = vsub.f32 %v877, %v887
    %v890 = vmul.f32 %v888, %v888
    %v891 = vmul.f32 %v889, %v889
    %v892 = vsel %vm72, %v890, 0.0
    %893 = vadd.xlane.f32.xlu0 %v892
    %v894 = vpop.xlane.xlu0 %893
    %v895 = vsel %vm72, %v891, 0.0
    %896 = vadd.xlane.f32.xlu0 %v895
    %v897 = vpop.xlane.xlu0 %896
    %v898 = vmul.f32 %v894, %v85
    %v899 = vmul.f32 %v897, %v85
    %v900 = vadd.f32 %v898, 1e-05
    %v901 = vadd.f32 %v899, 1e-05
    %v902 = vrsqrt.pop %v900
    %v903 = vmul.f32 %v902, %v900
    %v904 = vmul.f32 %v903, %v902
    %v905 = vmul.f32 0.5, %v904
    %v906 = vsub.f32 1.5, %v905
    %v907 = vmul.f32 %v902, %v906
    %vm908 = vweird.f32 %v900
    %vm909 = vweird.f32 %v902
    %vm910 = vmor %vm908, %vm909
    %v911 = vsel %vm910, %v902, %v907
    %v912 = vrsqrt.pop %v901
    %v913 = vmul.f32 %v912, %v901
    %v914 = vmul.f32 %v913, %v912
    %v915 = vmul.f32 0.5, %v914
    %v916 = vsub.f32 1.5, %v915
    %v917 = vmul.f32 %v912, %v916
    %vm918 = vweird.f32 %v901
    %vm919 = vweird.f32 %v912
    %vm920 = vmor %vm918, %vm919
    %v921 = vsel %vm920, %v912, %v917
    %v922 = vmul.f32 %v888, %v911
    %v923 = vmul.f32 %v889, %v921
    %v925 = vperm.slane %v878, 0
    %v927 = vmul.f32 %v925, %v922
    %v928 = vmul.f32 %v925, %v923
    %v930 = vperm.slane %v879, 0
    %v932 = vadd.f32 %v927, %v930
    %v933 = vadd.f32 %v928, %v930
    %v934 = vld [vmem:[%s11] sm:$0xff]
    %v935 = vld [vmem:[%s11 + $0x8] sm:$0xff]
    %v936 = vld [vmem:[%s11 + $0x10] sm:$0xff]
    %v937 = vld [vmem:[%s11 + $0x18] sm:$0xff]
    %v938 = vld [vmem:[%s12] sm:$0x1]
    %v940 = vperm.slane %v938, 0
    %v943 = vsel %vm72, %v932, 0
    %v946 = vsel %vm72, %v933, 0
    %948 = vmatpush.msra.mxu0 0.0
    %949 = vmatpush.msra.mxu0 0.0
    %950 = vmatpush.msra.mxu0 0.0
    %951 = vmatpush.msra.mxu0 0.0
    %952 = vmatpush.msra.mxu0 0.0
    %953 = vmatpush.msra.mxu0 0.0
    %954 = vmatpush.msra.mxu0 0.0
    %955 = vmatpush.msra.mxu0 0.0
    %956 = vmatpush.msra.mxu0 0.0
    %957 = vmatpush.msra.mxu0 0.0
    %958 = vmatpush.msra.mxu0 0.0
    %959 = vmatpush.msra.mxu0 0.0
    %960 = vmatpush.msra.mxu0 %v937
    %961 = vmatpush.msra.mxu0 %v936
    %962 = vmatpush.msra.mxu0 %v935
    %963 = vmatpush.msra.mxu0 %v934
    %964 = vmatmul.f32.gmra.mxu0 %v943
    %v965 = vpop.f32.mrf.mxu0
    %v966 = vadd.f32 %v940, %v965
    %967 = vmatmul.f32.gmra.mxu0 %v946
    %v968 = vpop.f32.mrf.mxu0
    %v969 = vadd.f32 %v940, %v968
    %970 = vdwg.mxu0
    %v971 = vmul.f32 %v966, 0.5
    %v972 = vmul.f32 %v969, 0.5
    %v973 = vmul.f32 %v966, %v966
    %v974 = vmul.f32 %v969, %v969
    %v975 = vmul.f32 %v973, %v966
    %v976 = vmul.f32 %v974, %v969
    %v977 = vmul.f32 %v975, 0.044715
    %v978 = vmul.f32 %v976, 0.044715
    %v979 = vadd.f32 %v966, %v977
    %v980 = vadd.f32 %v969, %v978
    %v981 = vmul.f32 %v979, 0.7978846
    %v982 = vmul.f32 %v980, 0.7978846
    %v983 = vtanh.pop %v981
    %v984 = vtanh.pop %v982
    %v985 = vadd.f32 %v983, 1.0
    %v986 = vadd.f32 %v984, 1.0
    %v987 = vmul.f32 %v971, %v985
    %v988 = vmul.f32 %v972, %v986
    %v989 = vld [vmem:[%s13] sm:$0xff]
    %v990 = vld [vmem:[%s13 + $0x8] sm:$0xff]
    %v991 = vld [vmem:[%s13 + $0x10] sm:$0xff]
    %v992 = vld [vmem:[%s13 + $0x18] sm:$0xff]
    %v993 = vld [vmem:[%s13 + $0x20] sm:$0xff]
    %v994 = vld [vmem:[%s13 + $0x28] sm:$0xff]
    %v995 = vld [vmem:[%s13 + $0x30] sm:$0xff]
    %v996 = vld [vmem:[%s13 + $0x38] sm:$0xff]
    %v997 = vld [vmem:[%s13 + $0x40] sm:$0xff]
    %v998 = vld [vmem:[%s13 + $0x48] sm:$0xff]
    %v999 = vld [vmem:[%s13 + $0x50] sm:$0xff]
    %v1000 = vld [vmem:[%s13 + $0x58] sm:$0xff]
    %v1001 = vld [vmem:[%s13 + $0x60] sm:$0xff]
    %v1002 = vld [vmem:[%s13 + $0x68] sm:$0xff]
    %v1003 = vld [vmem:[%s13 + $0x70] sm:$0xff]
    %v1004 = vld [vmem:[%s13 + $0x78] sm:$0xff]
    %v1005 = vld [vmem:[%s14] sm:$0x1]
    %v1007 = vperm.slane %v1005, 0
    %1009 = vmatpush.msra.mxu0 %v1004
    %1010 = vmatpush.msra.mxu0 %v1003
    %1011 = vmatpush.msra.mxu0 %v1002
    %1012 = vmatpush.msra.mxu0 %v1001
    %1013 = vmatpush.msra.mxu0 %v1000
    %1014 = vmatpush.msra.mxu0 %v999
    %1015 = vmatpush.msra.mxu0 %v998
    %1016 = vmatpush.msra.mxu0 %v997
    %1017 = vmatpush.msra.mxu0 %v996
    %1018 = vmatpush.msra.mxu0 %v995
    %1019 = vmatpush.msra.mxu0 %v994
    %1020 = vmatpush.msra.mxu0 %v993
    %1021 = vmatpush.msra.mxu0 %v992
    %1022 = vmatpush.msra.mxu0 %v991
    %1023 = vmatpush.msra.mxu0 %v990
    %1024 = vmatpush.msra.mxu0 %v989
    %1025 = vmatmul.f32.gmra.mxu0 %v987
    %v1026 = vpop.f32.mrf.mxu0
    %v1027 = vadd.f32 %v1007, %v1026
    %1028 = vmatmul.f32.gmra.mxu0 %v988
    %v1029 = vpop.f32.mrf.mxu0
    %v1030 = vadd.f32 %v1007, %v1029
    %1031 = vdwg.mxu0
    %v1032 = vadd.f32 %v876, %v1027
    %v1033 = vadd.f32 %v877, %v1030
    %s1034 = scalar_lea.vmem %s2, 1
    %v1035 = vld [vmem:[%s1034] sm:$0x1]
    %s1036 = scalar_lea.vmem %s3, 1
    %v1037 = vld [vmem:[%s1036] sm:$0x1]
    %v1038 = vsel %vm72, %v1032, 0.0
    %1039 = vadd.xlane.f32.xlu0 %v1038
    %v1040 = vpop.xlane.xlu0 %1039
    %v1041 = vsel %vm72, %v1033, 0.0
    %1042 = vadd.xlane.f32.xlu0 %v1041
    %v1043 = vpop.xlane.xlu0 %1042
    %v1044 = vmul.f32 %v1040, %v85
    %v1045 = vmul.f32 %v1043, %v85
    %v1046 = vsub.f32 %v1032, %v1044
    %v1047 = vsub.f32 %v1033, %v1045
    %v1048 = vmul.f32 %v1046, %v1046
    %v1049 = vmul.f32 %v1047, %v1047
    %v1050 = vsel %vm72, %v1048, 0.0
    %1051 = vadd.xlane.f32.xlu0 %v1050
    %v1052 = vpop.xlane.xlu0 %1051
    %v1053 = vsel %vm72, %v1049, 0.0
    %1054 = vadd.xlane.f32.xlu0 %v1053
    %v1055 = vpop.xlane.xlu0 %1054
    %v1056 = vmul.f32 %v1052, %v85
    %v1057 = vmul.f32 %v1055, %v85
    %v1058 = vadd.f32 %v1056, 1e-05
    %v1059 = vadd.f32 %v1057, 1e-05
    %v1060 = vrsqrt.pop %v1058
    %v1061 = vmul.f32 %v1060, %v1058
    %v1062 = vmul.f32 %v1061, %v1060
    %v1063 = vmul.f32 0.5, %v1062
    %v1064 = vsub.f32 1.5, %v1063
    %v1065 = vmul.f32 %v1060, %v1064
    %vm1066 = vweird.f32 %v1058
    %vm1067 = vweird.f32 %v1060
    %vm1068 = vmor %vm1066, %vm1067
    %v1069 = vsel %vm1068, %v1060, %v1065
    %v1070 = vrsqrt.pop %v1059
    %v1071 = vmul.f32 %v1070, %v1059
    %v1072 = vmul.f32 %v1071, %v1070
    %v1073 = vmul.f32 0.5, %v1072
    %v1074 = vsub.f32 1.5, %v1073
    %v1075 = vmul.f32 %v1070, %v1074
    %vm1076 = vweird.f32 %v1059
    %vm1077 = vweird.f32 %v1070
    %vm1078 = vmor %vm1076, %vm1077
    %v1079 = vsel %vm1078, %v1070, %v1075
    %v1080 = vmul.f32 %v1046, %v1069
    %v1081 = vmul.f32 %v1047, %v1079
    %v1083 = vperm.slane %v1035, 0
    %v1085 = vmul.f32 %v1083, %v1080
    %v1086 = vmul.f32 %v1083, %v1081
    %v1088 = vperm.slane %v1037, 0
    %v1090 = vadd.f32 %v1085, %v1088
    %v1091 = vadd.f32 %v1086, %v1088
    %s1092 = scalar_lea.vmem %s4, 32
    %v1093 = vld [vmem:[%s1092] sm:$0xff]
    %v1094 = vld [vmem:[%s1092 + $0x8] sm:$0xff]
    %v1095 = vld [vmem:[%s1092 + $0x10] sm:$0xff]
    %v1096 = vld [vmem:[%s1092 + $0x18] sm:$0xff]
    %v1098 = vsel %vm72, %v1090, 0
    %v1101 = vsel %vm72, %v1091, 0
    %1103 = vmatpush.msra.mxu0 0.0
    %1104 = vmatpush.msra.mxu0 0.0
    %1105 = vmatpush.msra.mxu0 0.0
    %1106 = vmatpush.msra.mxu0 0.0
    %1107 = vmatpush.msra.mxu0 0.0
    %1108 = vmatpush.msra.mxu0 0.0
    %1109 = vmatpush.msra.mxu0 0.0
    %1110 = vmatpush.msra.mxu0 0.0
    %1111 = vmatpush.msra.mxu0 0.0
    %1112 = vmatpush.msra.mxu0 0.0
    %1113 = vmatpush.msra.mxu0 0.0
    %1114 = vmatpush.msra.mxu0 0.0
    %1115 = vmatpush.msra.mxu0 %v1096
    %1116 = vmatpush.msra.mxu0 %v1095
    %1117 = vmatpush.msra.mxu0 %v1094
    %1118 = vmatpush.msra.mxu0 %v1093
    %1119 = vmatmul.f32.gmra.mxu0 %v1098
    %v1120 = vpop.f32.mrf.mxu0
    %v1121 = vadd.f32 0.0, %v1120
    %1122 = vmatmul.f32.gmra.mxu0 %v1101
    %v1123 = vpop.f32.mrf.mxu0
    %v1124 = vadd.f32 0.0, %v1123
    %1125 = vdwg.mxu0
    %v1126 = vmul.f32 %v1121, 0.35355338
    %v1127 = vmul.f32 %v1124, 0.35355338
    %s1128 = scalar_lea.vmem %s5, 32
    %v1129 = vld [vmem:[%s1128] sm:$0xff]
    %v1130 = vld [vmem:[%s1128 + $0x8] sm:$0xff]
    %v1131 = vld [vmem:[%s1128 + $0x10] sm:$0xff]
    %v1132 = vld [vmem:[%s1128 + $0x18] sm:$0xff]
    %1133 = vmatpush.msra.mxu0 0.0
    %1134 = vmatpush.msra.mxu0 0.0
    %1135 = vmatpush.msra.mxu0 0.0
    %1136 = vmatpush.msra.mxu0 0.0
    %1137 = vmatpush.msra.mxu0 0.0
    %1138 = vmatpush.msra.mxu0 0.0
    %1139 = vmatpush.msra.mxu0 0.0
    %1140 = vmatpush.msra.mxu0 0.0
    %1141 = vmatpush.msra.mxu0 0.0
    %1142 = vmatpush.msra.mxu0 0.0
    %1143 = vmatpush.msra.mxu0 0.0
    %1144 = vmatpush.msra.mxu0 0.0
    %1145 = vmatpush.msra.mxu0 %v1132
    %1146 = vmatpush.msra.mxu0 %v1131
    %1147 = vmatpush.msra.mxu0 %v1130
    %1148 = vmatpush.msra.mxu0 %v1129
    %1149 = vmatmul.f32.gmra.mxu0 %v1098
    %v1150 = vpop.f32.mrf.mxu0
    %v1151 = vadd.f32 0.0, %v1150
    %1152 = vmatmul.f32.gmra.mxu0 %v1101
    %v1153 = vpop.f32.mrf.mxu0
    %v1154 = vadd.f32 0.0, %v1153
    %1155 = vdwg.mxu0
    %s1156 = scalar_lea.vmem %s6, 32
    %v1157 = vld [vmem:[%s1156] sm:$0xff]
    %v1158 = vld [vmem:[%s1156 + $0x8] sm:$0xff]
    %v1159 = vld [vmem:[%s1156 + $0x10] sm:$0xff]
    %v1160 = vld [vmem:[%s1156 + $0x18] sm:$0xff]
    %1161 = vmatpush.msra.mxu0 0.0
    %1162 = vmatpush.msra.mxu0 0.0
    %1163 = vmatpush.msra.mxu0 0.0
    %1164 = vmatpush.msra.mxu0 0.0
    %1165 = vmatpush.msra.mxu0 0.0
    %1166 = vmatpush.msra.mxu0 0.0
    %1167 = vmatpush.msra.mxu0 0.0
    %1168 = vmatpush.msra.mxu0 0.0
    %1169 = vmatpush.msra.mxu0 0.0
    %1170 = vmatpush.msra.mxu0 0.0
    %1171 = vmatpush.msra.mxu0 0.0
    %1172 = vmatpush.msra.mxu0 0.0
    %1173 = vmatpush.msra.mxu0 %v1160
    %1174 = vmatpush.msra.mxu0 %v1159
    %1175 = vmatpush.msra.mxu0 %v1158
    %1176 = vmatpush.msra.mxu0 %v1157
    %1177 = vmatmul.f32.gmra.mxu0 %v1098
    %v1178 = vpop.f32.mrf.mxu0
    %v1179 = vadd.f32 0.0, %v1178
    %1180 = vmatmul.f32.gmra.mxu0 %v1101
    %v1181 = vpop.f32.mrf.mxu0
    %v1182 = vadd.f32 0.0, %v1181
    %1183 = vdwg.mxu0
    %s1184 = scalar_lea.vmem %s7, 32
    %v1185 = vld [vmem:[%s1184] sm:$0xff]
    %v1186 = vld [vmem:[%s1184 + $0x8] sm:$0xff]
    %v1187 = vld [vmem:[%s1184 + $0x10] sm:$0xff]
    %v1188 = vld [vmem:[%s1184 + $0x18] sm:$0xff]
    %v1190 = vsel %vm227, %v1126, 0
    %v1193 = vsel %vm227, %v1151, 0
    %1195 = vmatpush.xpose.msra.mxu0 0.0
    %1196 = vmatpush.xpose.msra.mxu0 0.0
    %1197 = vmatpush.xpose.msra.mxu0 0.0
    %1198 = vmatpush.xpose.msra.mxu0 0.0
    %1199 = vmatpush.xpose.msra.mxu0 0.0
    %1200 = vmatpush.xpose.msra.mxu0 0.0
    %1201 = vmatpush.xpose.msra.mxu0 0.0
    %1202 = vmatpush.xpose.msra.mxu0 0.0
    %1203 = vmatpush.xpose.msra.mxu0 0.0
    %1204 = vmatpush.xpose.msra.mxu0 0.0
    %1205 = vmatpush.xpose.msra.mxu0 0.0
    %1206 = vmatpush.xpose.msra.mxu0 0.0
    %1207 = vmatpush.xpose.msra.mxu0 0.0
    %1208 = vmatpush.xpose.msra.mxu0 0.0
    %1209 = vmatpush.xpose.msra.mxu0 0.0
    %1210 = vmatpush.xpose.msra.mxu0 %v1193
    %1211 = vmatmul.f32.gmra.mxu0 %v1190
    %v1212 = vpop.f32.mrf.mxu0
    %v1213 = vadd.f32 0.0, %v1212
    %1214 = vdwg.mxu0
    %v1216 = vsel %vm227, %v1127, 0
    %v1219 = vsel %vm227, %v1154, 0
    %1221 = vmatpush.xpose.msra.mxu0 0.0
    %1222 = vmatpush.xpose.msra.mxu0 0.0
    %1223 = vmatpush.xpose.msra.mxu0 0.0
    %1224 = vmatpush.xpose.msra.mxu0 0.0
    %1225 = vmatpush.xpose.msra.mxu0 0.0
    %1226 = vmatpush.xpose.msra.mxu0 0.0
    %1227 = vmatpush.xpose.msra.mxu0 0.0
    %1228 = vmatpush.xpose.msra.mxu0 0.0
    %1229 = vmatpush.xpose.msra.mxu0 0.0
    %1230 = vmatpush.xpose.msra.mxu0 0.0
    %1231 = vmatpush.xpose.msra.mxu0 0.0
    %1232 = vmatpush.xpose.msra.mxu0 0.0
    %1233 = vmatpush.xpose.msra.mxu0 0.0
    %1234 = vmatpush.xpose.msra.mxu0 0.0
    %1235 = vmatpush.xpose.msra.mxu0 0.0
    %1236 = vmatpush.xpose.msra.mxu0 %v1219
    %1237 = vmatmul.f32.gmra.mxu0 %v1216
    %v1238 = vpop.f32.mrf.mxu0
    %v1239 = vadd.f32 0.0, %v1238
    %1240 = vdwg.mxu0
    %v1241 = vsel %vm281, %v1213, -1e+30
    %v1242 = vsel %vm281, %v1239, -1e+30
    %v1243 = vsel %vm227, %v1241, -inf
    %1244 = vmax.xlane.f32.xlu0 %v1243
    %v1245 = vpop.xlane.xlu0 %1244
    %v1246 = vsel %vm227, %v1242, -inf
    %1247 = vmax.xlane.f32.xlu0 %v1246
    %v1248 = vpop.xlane.xlu0 %1247
    %v1249 = vsub.f32 %v1241, %v1245
    %v1250 = vsub.f32 %v1242, %v1248
    %v1251 = vmul.f32 %v1249, 1.442695
    %v1252 = vpow.pop %v1251
    %v1253 = vmul.f32 %v1250, 1.442695
    %v1254 = vpow.pop %v1253
    %v1255 = vsel %vm227, %v1252, 0.0
    %1256 = vadd.xlane.f32.xlu0 %v1255
    %v1257 = vpop.xlane.xlu0 %1256
    %v1258 = vsel %vm227, %v1254, 0.0
    %1259 = vadd.xlane.f32.xlu0 %v1258
    %v1260 = vpop.xlane.xlu0 %1259
    %v1261 = vrcp.pop %v1257
    %v1262 = vrcp.pop %v1260
    %v1263 = vmul.f32 %v1252, %v1261
    %v1264 = vmul.f32 %v1254, %v1262
    %v1266 = vsel %vm227, %v1263, 0
    %1268 = vmatpush.msra.mxu0 0.0
    %1269 = vmatpush.msra.mxu0 0.0
    %1270 = vmatpush.msra.mxu0 0.0
    %1271 = vmatpush.msra.mxu0 0.0
    %1272 = vmatpush.msra.mxu0 0.0
    %1273 = vmatpush.msra.mxu0 0.0
    %1274 = vmatpush.msra.mxu0 0.0
    %1275 = vmatpush.msra.mxu0 0.0
    %1276 = vmatpush.msra.mxu0 0.0
    %1277 = vmatpush.msra.mxu0 0.0
    %1278 = vmatpush.msra.mxu0 0.0
    %1279 = vmatpush.msra.mxu0 0.0
    %1280 = vmatpush.msra.mxu0 0.0
    %1281 = vmatpush.msra.mxu0 0.0
    %1282 = vmatpush.msra.mxu0 0.0
    %1283 = vmatpush.msra.mxu0 %v1179
    %1284 = vmatmul.f32.gmra.mxu0 %v1266
    %v1285 = vpop.f32.mrf.mxu0
    %v1286 = vadd.f32 0.0, %v1285
    %1287 = vdwg.mxu0
    %v1289 = vsel %vm227, %v1264, 0
    %1291 = vmatpush.msra.mxu0 0.0
    %1292 = vmatpush.msra.mxu0 0.0
    %1293 = vmatpush.msra.mxu0 0.0
    %1294 = vmatpush.msra.mxu0 0.0
    %1295 = vmatpush.msra.mxu0 0.0
    %1296 = vmatpush.msra.mxu0 0.0
    %1297 = vmatpush.msra.mxu0 0.0
    %1298 = vmatpush.msra.mxu0 0.0
    %1299 = vmatpush.msra.mxu0 0.0
    %1300 = vmatpush.msra.mxu0 0.0
    %1301 = vmatpush.msra.mxu0 0.0
    %1302 = vmatpush.msra.mxu0 0.0
    %1303 = vmatpush.msra.mxu0 0.0
    %1304 = vmatpush.msra.mxu0 0.0
    %1305 = vmatpush.msra.mxu0 0.0
    %1306 = vmatpush.msra.mxu0 %v1182
    %1307 = vmatmul.f32.gmra.mxu0 %v1289
    %v1308 = vpop.f32.mrf.mxu0
    %v1309 = vadd.f32 0.0, %v1308
    %1310 = vdwg.mxu0
    %1311 = vrot.lane.b32.xlu0 %v1126, 120
    %v1312 = vpop.permute.xlu0 %1311
    %1313 = vrot.lane.b32.xlu0 %v1151, 120
    %v1314 = vpop.permute.xlu0 %1313
    %v1315 = vsel %vm227, %v1312, 0
    %v1317 = vsel %vm227, %v1314, 0
    %1319 = vmatpush.xpose.msra.mxu0 0.0
    %1320 = vmatpush.xpose.msra.mxu0 0.0
    %1321 = vmatpush.xpose.msra.mxu0 0.0
    %1322 = vmatpush.xpose.msra.mxu0 0.0
    %1323 = vmatpush.xpose.msra.mxu0 0.0
    %1324 = vmatpush.xpose.msra.mxu0 0.0
    %1325 = vmatpush.xpose.msra.mxu0 0.0
    %1326 = vmatpush.xpose.msra.mxu0 0.0
    %1327 = vmatpush.xpose.msra.mxu0 0.0
    %1328 = vmatpush.xpose.msra.mxu0 0.0
    %1329 = vmatpush.xpose.msra.mxu0 0.0
    %1330 = vmatpush.xpose.msra.mxu0 0.0
    %1331 = vmatpush.xpose.msra.mxu0 0.0
    %1332 = vmatpush.xpose.msra.mxu0 0.0
    %1333 = vmatpush.xpose.msra.mxu0 0.0
    %1334 = vmatpush.xpose.msra.mxu0 %v1317
    %1335 = vmatmul.f32.gmra.mxu0 %v1315
    %v1336 = vpop.f32.mrf.mxu0
    %v1337 = vadd.f32 0.0, %v1336
    %1338 = vdwg.mxu0
    %1339 = vrot.lane.b32.xlu0 %v1127, 120
    %v1340 = vpop.permute.xlu0 %1339
    %1341 = vrot.lane.b32.xlu0 %v1154, 120
    %v1342 = vpop.permute.xlu0 %1341
    %v1343 = vsel %vm227, %v1340, 0
    %v1345 = vsel %vm227, %v1342, 0
    %1347 = vmatpush.xpose.msra.mxu0 0.0
    %1348 = vmatpush.xpose.msra.mxu0 0.0
    %1349 = vmatpush.xpose.msra.mxu0 0.0
    %1350 = vmatpush.xpose.msra.mxu0 0.0
    %1351 = vmatpush.xpose.msra.mxu0 0.0
    %1352 = vmatpush.xpose.msra.mxu0 0.0
    %1353 = vmatpush.xpose.msra.mxu0 0.0
    %1354 = vmatpush.xpose.msra.mxu0 0.0
    %1355 = vmatpush.xpose.msra.mxu0 0.0
    %1356 = vmatpush.xpose.msra.mxu0 0.0
    %1357 = vmatpush.xpose.msra.mxu0 0.0
    %1358 = vmatpush.xpose.msra.mxu0 0.0
    %1359 = vmatpush.xpose.msra.mxu0 0.0
    %1360 = vmatpush.xpose.msra.mxu0 0.0
    %1361 = vmatpush.xpose.msra.mxu0 0.0
    %1362 = vmatpush.xpose.msra.mxu0 %v1345
    %1363 = vmatmul.f32.gmra.mxu0 %v1343
    %v1364 = vpop.f32.mrf.mxu0
    %v1365 = vadd.f32 0.0, %v1364
    %1366 = vdwg.mxu0
    %v1367 = vsel %vm281, %v1337, -1e+30
    %v1368 = vsel %vm281, %v1365, -1e+30
    %v1369 = vsel %vm227, %v1367, -inf
    %1370 = vmax.xlane.f32.xlu0 %v1369
    %v1371 = vpop.xlane.xlu0 %1370
    %v1372 = vsel %vm227, %v1368, -inf
    %1373 = vmax.xlane.f32.xlu0 %v1372
    %v1374 = vpop.xlane.xlu0 %1373
    %v1375 = vsub.f32 %v1367, %v1371
    %v1376 = vsub.f32 %v1368, %v1374
    %v1377 = vmul.f32 %v1375, 1.442695
    %v1378 = vpow.pop %v1377
    %v1379 = vmul.f32 %v1376, 1.442695
    %v1380 = vpow.pop %v1379
    %v1381 = vsel %vm227, %v1378, 0.0
    %1382 = vadd.xlane.f32.xlu0 %v1381
    %v1383 = vpop.xlane.xlu0 %1382
    %v1384 = vsel %vm227, %v1380, 0.0
    %1385 = vadd.xlane.f32.xlu0 %v1384
    %v1386 = vpop.xlane.xlu0 %1385
    %v1387 = vrcp.pop %v1383
    %v1388 = vrcp.pop %v1386
    %v1389 = vmul.f32 %v1378, %v1387
    %v1390 = vmul.f32 %v1380, %v1388
    %1392 = vrot.lane.b32.xlu0 %v1179, 120
    %v1393 = vpop.permute.xlu0 %1392
    %v1396 = vsel %vm227, %v1389, 0
    %1398 = vmatpush.msra.mxu0 0.0
    %1399 = vmatpush.msra.mxu0 0.0
    %1400 = vmatpush.msra.mxu0 0.0
    %1401 = vmatpush.msra.mxu0 0.0
    %1402 = vmatpush.msra.mxu0 0.0
    %1403 = vmatpush.msra.mxu0 0.0
    %1404 = vmatpush.msra.mxu0 0.0
    %1405 = vmatpush.msra.mxu0 0.0
    %1406 = vmatpush.msra.mxu0 0.0
    %1407 = vmatpush.msra.mxu0 0.0
    %1408 = vmatpush.msra.mxu0 0.0
    %1409 = vmatpush.msra.mxu0 0.0
    %1410 = vmatpush.msra.mxu0 0.0
    %1411 = vmatpush.msra.mxu0 0.0
    %1412 = vmatpush.msra.mxu0 0.0
    %1413 = vmatpush.msra.mxu0 %v1393
    %1414 = vmatmul.f32.gmra.mxu0 %v1396
    %v1415 = vpop.f32.mrf.mxu0
    %v1416 = vadd.f32 0.0, %v1415
    %1417 = vdwg.mxu0
    %1419 = vrot.lane.b32.xlu0 %v1182, 120
    %v1420 = vpop.permute.xlu0 %1419
    %v1423 = vsel %vm227, %v1390, 0
    %1425 = vmatpush.msra.mxu0 0.0
    %1426 = vmatpush.msra.mxu0 0.0
    %1427 = vmatpush.msra.mxu0 0.0
    %1428 = vmatpush.msra.mxu0 0.0
    %1429 = vmatpush.msra.mxu0 0.0
    %1430 = vmatpush.msra.mxu0 0.0
    %1431 = vmatpush.msra.mxu0 0.0
    %1432 = vmatpush.msra.mxu0 0.0
    %1433 = vmatpush.msra.mxu0 0.0
    %1434 = vmatpush.msra.mxu0 0.0
    %1435 = vmatpush.msra.mxu0 0.0
    %1436 = vmatpush.msra.mxu0 0.0
    %1437 = vmatpush.msra.mxu0 0.0
    %1438 = vmatpush.msra.mxu0 0.0
    %1439 = vmatpush.msra.mxu0 0.0
    %1440 = vmatpush.msra.mxu0 %v1420
    %1441 = vmatmul.f32.gmra.mxu0 %v1423
    %v1442 = vpop.f32.mrf.mxu0
    %v1443 = vadd.f32 0.0, %v1442
    %1444 = vdwg.mxu0
    %v1446 = vsel %vm227, %v1416, 0
    %v1449 = vsel %vm227, %v1443, 0
    %1451 = vmatpush.msra.mxu0 0.0
    %1452 = vmatpush.msra.mxu0 0.0
    %1453 = vmatpush.msra.mxu0 0.0
    %1454 = vmatpush.msra.mxu0 0.0
    %1455 = vmatpush.msra.mxu0 0.0
    %1456 = vmatpush.msra.mxu0 0.0
    %1457 = vmatpush.msra.mxu0 0.0
    %1458 = vmatpush.msra.mxu0 0.0
    %1459 = vmatpush.msra.mxu0 0.0
    %1460 = vmatpush.msra.mxu0 0.0
    %1461 = vmatpush.msra.mxu0 0.0
    %1462 = vmatpush.msra.mxu0 0.0
    %1463 = vmatpush.msra.mxu0 0.0
    %1464 = vmatpush.msra.mxu0 0.0
    %1465 = vmatpush.msra.mxu0 0.0
    %1466 = vmatpush.msra.mxu0 %v1186
    %1467 = vmatmul.f32.gmra.mxu0 %v1446
    %v1468 = vpop.f32.mrf.mxu0
    %v1469 = vadd.f32 0.0, %v1468
    %1470 = vmatmul.f32.gmra.mxu0 %v1449
    %v1471 = vpop.f32.mrf.mxu0
    %v1472 = vadd.f32 0.0, %v1471
    %1473 = vdwg.mxu0
    %v1475 = vsel %vm227, %v1286, 0
    %v1478 = vsel %vm227, %v1309, 0
    %1480 = vmatpush.msra.mxu0 0.0
    %1481 = vmatpush.msra.mxu0 0.0
    %1482 = vmatpush.msra.mxu0 0.0
    %1483 = vmatpush.msra.mxu0 0.0
    %1484 = vmatpush.msra.mxu0 0.0
    %1485 = vmatpush.msra.mxu0 0.0
    %1486 = vmatpush.msra.mxu0 0.0
    %1487 = vmatpush.msra.mxu0 0.0
    %1488 = vmatpush.msra.mxu0 0.0
    %1489 = vmatpush.msra.mxu0 0.0
    %1490 = vmatpush.msra.mxu0 0.0
    %1491 = vmatpush.msra.mxu0 0.0
    %1492 = vmatpush.msra.mxu0 0.0
    %1493 = vmatpush.msra.mxu0 0.0
    %1494 = vmatpush.msra.mxu0 0.0
    %1495 = vmatpush.msra.mxu0 %v1185
    %1496 = vmatmul.f32.gmra.mxu0 %v1475
    %v1497 = vpop.f32.mrf.mxu0
    %v1498 = vadd.f32 %v1469, %v1497
    %1499 = vmatmul.f32.gmra.mxu0 %v1478
    %v1500 = vpop.f32.mrf.mxu0
    %v1501 = vadd.f32 %v1472, %v1500
    %1502 = vdwg.mxu0
    %1503 = vrot.lane.b32.xlu0 %v1126, 112
    %v1504 = vpop.permute.xlu0 %1503
    %1505 = vrot.lane.b32.xlu0 %v1151, 112
    %v1506 = vpop.permute.xlu0 %1505
    %v1507 = vsel %vm227, %v1504, 0
    %v1509 = vsel %vm227, %v1506, 0
    %1511 = vmatpush.xpose.msra.mxu0 0.0
    %1512 = vmatpush.xpose.msra.mxu0 0.0
    %1513 = vmatpush.xpose.msra.mxu0 0.0
    %1514 = vmatpush.xpose.msra.mxu0 0.0
    %1515 = vmatpush.xpose.msra.mxu0 0.0
    %1516 = vmatpush.xpose.msra.mxu0 0.0
    %1517 = vmatpush.xpose.msra.mxu0 0.0
    %1518 = vmatpush.xpose.msra.mxu0 0.0
    %1519 = vmatpush.xpose.msra.mxu0 0.0
    %1520 = vmatpush.xpose.msra.mxu0 0.0
    %1521 = vmatpush.xpose.msra.mxu0 0.0
    %1522 = vmatpush.xpose.msra.mxu0 0.0
    %1523 = vmatpush.xpose.msra.mxu0 0.0
    %1524 = vmatpush.xpose.msra.mxu0 0.0
    %1525 = vmatpush.xpose.msra.mxu0 0.0
    %1526 = vmatpush.xpose.msra.mxu0 %v1509
    %1527 = vmatmul.f32.gmra.mxu0 %v1507
    %v1528 = vpop.f32.mrf.mxu0
    %v1529 = vadd.f32 0.0, %v1528
    %1530 = vdwg.mxu0
    %1531 = vrot.lane.b32.xlu0 %v1127, 112
    %v1532 = vpop.permute.xlu0 %1531
    %1533 = vrot.lane.b32.xlu0 %v1154, 112
    %v1534 = vpop.permute.xlu0 %1533
    %v1535 = vsel %vm227, %v1532, 0
    %v1537 = vsel %vm227, %v1534, 0
    %1539 = vmatpush.xpose.msra.mxu0 0.0
    %1540 = vmatpush.xpose.msra.mxu0 0.0
    %1541 = vmatpush.xpose.msra.mxu0 0.0
    %1542 = vmatpush.xpose.msra.mxu0 0.0
    %1543 = vmatpush.xpose.msra.mxu0 0.0
    %1544 = vmatpush.xpose.msra.mxu0 0.0
    %1545 = vmatpush.xpose.msra.mxu0 0.0
    %1546 = vmatpush.xpose.msra.mxu0 0.0
    %1547 = vmatpush.xpose.msra.mxu0 0.0
    %1548 = vmatpush.xpose.msra.mxu0 0.0
    %1549 = vmatpush.xpose.msra.mxu0 0.0
    %1550 = vmatpush.xpose.msra.mxu0 0.0
    %1551 = vmatpush.xpose.msra.mxu0 0.0
    %1552 = vmatpush.xpose.msra.mxu0 0.0
    %1553 = vmatpush.xpose.msra.mxu0 0.0
    %1554 = vmatpush.xpose.msra.mxu0 %v1537
    %1555 = vmatmul.f32.gmra.mxu0 %v1535
    %v1556 = vpop.f32.mrf.mxu0
    %v1557 = vadd.f32 0.0, %v1556
    %1558 = vdwg.mxu0
    %v1559 = vsel %vm281, %v1529, -1e+30
    %v1560 = vsel %vm281, %v1557, -1e+30
    %v1561 = vsel %vm227, %v1559, -inf
    %1562 = vmax.xlane.f32.xlu0 %v1561
    %v1563 = vpop.xlane.xlu0 %1562
    %v1564 = vsel %vm227, %v1560, -inf
    %1565 = vmax.xlane.f32.xlu0 %v1564
    %v1566 = vpop.xlane.xlu0 %1565
    %v1567 = vsub.f32 %v1559, %v1563
    %v1568 = vsub.f32 %v1560, %v1566
    %v1569 = vmul.f32 %v1567, 1.442695
    %v1570 = vpow.pop %v1569
    %v1571 = vmul.f32 %v1568, 1.442695
    %v1572 = vpow.pop %v1571
    %v1573 = vsel %vm227, %v1570, 0.0
    %1574 = vadd.xlane.f32.xlu0 %v1573
    %v1575 = vpop.xlane.xlu0 %1574
    %v1576 = vsel %vm227, %v1572, 0.0
    %1577 = vadd.xlane.f32.xlu0 %v1576
    %v1578 = vpop.xlane.xlu0 %1577
    %v1579 = vrcp.pop %v1575
    %v1580 = vrcp.pop %v1578
    %v1581 = vmul.f32 %v1570, %v1579
    %v1582 = vmul.f32 %v1572, %v1580
    %1583 = vrot.lane.b32.xlu0 %v1179, 112
    %v1584 = vpop.permute.xlu0 %1583
    %v1587 = vsel %vm227, %v1581, 0
    %1589 = vmatpush.msra.mxu0 0.0
    %1590 = vmatpush.msra.mxu0 0.0
    %1591 = vmatpush.msra.mxu0 0.0
    %1592 = vmatpush.msra.mxu0 0.0
    %1593 = vmatpush.msra.mxu0 0.0
    %1594 = vmatpush.msra.mxu0 0.0
    %1595 = vmatpush.msra.mxu0 0.0
    %1596 = vmatpush.msra.mxu0 0.0
    %1597 = vmatpush.msra.mxu0 0.0
    %1598 = vmatpush.msra.mxu0 0.0
    %1599 = vmatpush.msra.mxu0 0.0
    %1600 = vmatpush.msra.mxu0 0.0
    %1601 = vmatpush.msra.mxu0 0.0
    %1602 = vmatpush.msra.mxu0 0.0
    %1603 = vmatpush.msra.mxu0 0.0
    %1604 = vmatpush.msra.mxu0 %v1584
    %1605 = vmatmul.f32.gmra.mxu0 %v1587
    %v1606 = vpop.f32.mrf.mxu0
    %v1607 = vadd.f32 0.0, %v1606
    %1608 = vdwg.mxu0
    %1609 = vrot.lane.b32.xlu0 %v1182, 112
    %v1610 = vpop.permute.xlu0 %1609
    %v1613 = vsel %vm227, %v1582, 0
    %1615 = vmatpush.msra.mxu0 0.0
    %1616 = vmatpush.msra.mxu0 0.0
    %1617 = vmatpush.msra.mxu0 0.0
    %1618 = vmatpush.msra.mxu0 0.0
    %1619 = vmatpush.msra.mxu0 0.0
    %1620 = vmatpush.msra.mxu0 0.0
    %1621 = vmatpush.msra.mxu0 0.0
    %1622 = vmatpush.msra.mxu0 0.0
    %1623 = vmatpush.msra.mxu0 0.0
    %1624 = vmatpush.msra.mxu0 0.0
    %1625 = vmatpush.msra.mxu0 0.0
    %1626 = vmatpush.msra.mxu0 0.0
    %1627 = vmatpush.msra.mxu0 0.0
    %1628 = vmatpush.msra.mxu0 0.0
    %1629 = vmatpush.msra.mxu0 0.0
    %1630 = vmatpush.msra.mxu0 %v1610
    %1631 = vmatmul.f32.gmra.mxu0 %v1613
    %v1632 = vpop.f32.mrf.mxu0
    %v1633 = vadd.f32 0.0, %v1632
    %1634 = vdwg.mxu0
    %v1636 = vsel %vm227, %v1607, 0
    %v1639 = vsel %vm227, %v1633, 0
    %1641 = vmatpush.msra.mxu0 0.0
    %1642 = vmatpush.msra.mxu0 0.0
    %1643 = vmatpush.msra.mxu0 0.0
    %1644 = vmatpush.msra.mxu0 0.0
    %1645 = vmatpush.msra.mxu0 0.0
    %1646 = vmatpush.msra.mxu0 0.0
    %1647 = vmatpush.msra.mxu0 0.0
    %1648 = vmatpush.msra.mxu0 0.0
    %1649 = vmatpush.msra.mxu0 0.0
    %1650 = vmatpush.msra.mxu0 0.0
    %1651 = vmatpush.msra.mxu0 0.0
    %1652 = vmatpush.msra.mxu0 0.0
    %1653 = vmatpush.msra.mxu0 0.0
    %1654 = vmatpush.msra.mxu0 0.0
    %1655 = vmatpush.msra.mxu0 0.0
    %1656 = vmatpush.msra.mxu0 %v1187
    %1657 = vmatmul.f32.gmra.mxu0 %v1636
    %v1658 = vpop.f32.mrf.mxu0
    %v1659 = vadd.f32 0.0, %v1658
    %1660 = vmatmul.f32.gmra.mxu0 %v1639
    %v1661 = vpop.f32.mrf.mxu0
    %v1662 = vadd.f32 0.0, %v1661
    %1663 = vdwg.mxu0
    %v1664 = vadd.f32 %v1498, %v1659
    %v1665 = vadd.f32 %v1501, %v1662
    %1666 = vrot.lane.b32.xlu0 %v1126, 104
    %v1667 = vpop.permute.xlu0 %1666
    %1668 = vrot.lane.b32.xlu0 %v1151, 104
    %v1669 = vpop.permute.xlu0 %1668
    %v1670 = vsel %vm227, %v1667, 0
    %v1672 = vsel %vm227, %v1669, 0
    %1674 = vmatpush.xpose.msra.mxu0 0.0
    %1675 = vmatpush.xpose.msra.mxu0 0.0
    %1676 = vmatpush.xpose.msra.mxu0 0.0
    %1677 = vmatpush.xpose.msra.mxu0 0.0
    %1678 = vmatpush.xpose.msra.mxu0 0.0
    %1679 = vmatpush.xpose.msra.mxu0 0.0
    %1680 = vmatpush.xpose.msra.mxu0 0.0
    %1681 = vmatpush.xpose.msra.mxu0 0.0
    %1682 = vmatpush.xpose.msra.mxu0 0.0
    %1683 = vmatpush.xpose.msra.mxu0 0.0
    %1684 = vmatpush.xpose.msra.mxu0 0.0
    %1685 = vmatpush.xpose.msra.mxu0 0.0
    %1686 = vmatpush.xpose.msra.mxu0 0.0
    %1687 = vmatpush.xpose.msra.mxu0 0.0
    %1688 = vmatpush.xpose.msra.mxu0 0.0
    %1689 = vmatpush.xpose.msra.mxu0 %v1672
    %1690 = vmatmul.f32.gmra.mxu0 %v1670
    %v1691 = vpop.f32.mrf.mxu0
    %v1692 = vadd.f32 0.0, %v1691
    %1693 = vdwg.mxu0
    %1694 = vrot.lane.b32.xlu0 %v1127, 104
    %v1695 = vpop.permute.xlu0 %1694
    %1696 = vrot.lane.b32.xlu0 %v1154, 104
    %v1697 = vpop.permute.xlu0 %1696
    %v1698 = vsel %vm227, %v1695, 0
    %v1700 = vsel %vm227, %v1697, 0
    %1702 = vmatpush.xpose.msra.mxu0 0.0
    %1703 = vmatpush.xpose.msra.mxu0 0.0
    %1704 = vmatpush.xpose.msra.mxu0 0.0
    %1705 = vmatpush.xpose.msra.mxu0 0.0
    %1706 = vmatpush.xpose.msra.mxu0 0.0
    %1707 = vmatpush.xpose.msra.mxu0 0.0
    %1708 = vmatpush.xpose.msra.mxu0 0.0
    %1709 = vmatpush.xpose.msra.mxu0 0.0
    %1710 = vmatpush.xpose.msra.mxu0 0.0
    %1711 = vmatpush.xpose.msra.mxu0 0.0
    %1712 = vmatpush.xpose.msra.mxu0 0.0
    %1713 = vmatpush.xpose.msra.mxu0 0.0
    %1714 = vmatpush.xpose.msra.mxu0 0.0
    %1715 = vmatpush.xpose.msra.mxu0 0.0
    %1716 = vmatpush.xpose.msra.mxu0 0.0
    %1717 = vmatpush.xpose.msra.mxu0 %v1700
    %1718 = vmatmul.f32.gmra.mxu0 %v1698
    %v1719 = vpop.f32.mrf.mxu0
    %v1720 = vadd.f32 0.0, %v1719
    %1721 = vdwg.mxu0
    %v1722 = vsel %vm281, %v1692, -1e+30
    %v1723 = vsel %vm281, %v1720, -1e+30
    %v1724 = vsel %vm227, %v1722, -inf
    %1725 = vmax.xlane.f32.xlu0 %v1724
    %v1726 = vpop.xlane.xlu0 %1725
    %v1727 = vsel %vm227, %v1723, -inf
    %1728 = vmax.xlane.f32.xlu0 %v1727
    %v1729 = vpop.xlane.xlu0 %1728
    %v1730 = vsub.f32 %v1722, %v1726
    %v1731 = vsub.f32 %v1723, %v1729
    %v1732 = vmul.f32 %v1730, 1.442695
    %v1733 = vpow.pop %v1732
    %v1734 = vmul.f32 %v1731, 1.442695
    %v1735 = vpow.pop %v1734
    %v1736 = vsel %vm227, %v1733, 0.0
    %1737 = vadd.xlane.f32.xlu0 %v1736
    %v1738 = vpop.xlane.xlu0 %1737
    %v1739 = vsel %vm227, %v1735, 0.0
    %1740 = vadd.xlane.f32.xlu0 %v1739
    %v1741 = vpop.xlane.xlu0 %1740
    %v1742 = vrcp.pop %v1738
    %v1743 = vrcp.pop %v1741
    %v1744 = vmul.f32 %v1733, %v1742
    %v1745 = vmul.f32 %v1735, %v1743
    %1746 = vrot.lane.b32.xlu0 %v1179, 104
    %v1747 = vpop.permute.xlu0 %1746
    %v1750 = vsel %vm227, %v1744, 0
    %1752 = vmatpush.msra.mxu0 0.0
    %1753 = vmatpush.msra.mxu0 0.0
    %1754 = vmatpush.msra.mxu0 0.0
    %1755 = vmatpush.msra.mxu0 0.0
    %1756 = vmatpush.msra.mxu0 0.0
    %1757 = vmatpush.msra.mxu0 0.0
    %1758 = vmatpush.msra.mxu0 0.0
    %1759 = vmatpush.msra.mxu0 0.0
    %1760 = vmatpush.msra.mxu0 0.0
    %1761 = vmatpush.msra.mxu0 0.0
    %1762 = vmatpush.msra.mxu0 0.0
    %1763 = vmatpush.msra.mxu0 0.0
    %1764 = vmatpush.msra.mxu0 0.0
    %1765 = vmatpush.msra.mxu0 0.0
    %1766 = vmatpush.msra.mxu0 0.0
    %1767 = vmatpush.msra.mxu0 %v1747
    %1768 = vmatmul.f32.gmra.mxu0 %v1750
    %v1769 = vpop.f32.mrf.mxu0
    %v1770 = vadd.f32 0.0, %v1769
    %1771 = vdwg.mxu0
    %1772 = vrot.lane.b32.xlu0 %v1182, 104
    %v1773 = vpop.permute.xlu0 %1772
    %v1776 = vsel %vm227, %v1745, 0
    %1778 = vmatpush.msra.mxu0 0.0
    %1779 = vmatpush.msra.mxu0 0.0
    %1780 = vmatpush.msra.mxu0 0.0
    %1781 = vmatpush.msra.mxu0 0.0
    %1782 = vmatpush.msra.mxu0 0.0
    %1783 = vmatpush.msra.mxu0 0.0
    %1784 = vmatpush.msra.mxu0 0.0
    %1785 = vmatpush.msra.mxu0 0.0
    %1786 = vmatpush.msra.mxu0 0.0
    %1787 = vmatpush.msra.mxu0 0.0
    %1788 = vmatpush.msra.mxu0 0.0
    %1789 = vmatpush.msra.mxu0 0.0
    %1790 = vmatpush.msra.mxu0 0.0
    %1791 = vmatpush.msra.mxu0 0.0
    %1792 = vmatpush.msra.mxu0 0.0
    %1793 = vmatpush.msra.mxu0 %v1773
    %1794 = vmatmul.f32.gmra.mxu0 %v1776
    %v1795 = vpop.f32.mrf.mxu0
    %v1796 = vadd.f32 0.0, %v1795
    %1797 = vdwg.mxu0
    %v1799 = vsel %vm227, %v1770, 0
    %v1802 = vsel %vm227, %v1796, 0
    %1804 = vmatpush.msra.mxu0 0.0
    %1805 = vmatpush.msra.mxu0 0.0
    %1806 = vmatpush.msra.mxu0 0.0
    %1807 = vmatpush.msra.mxu0 0.0
    %1808 = vmatpush.msra.mxu0 0.0
    %1809 = vmatpush.msra.mxu0 0.0
    %1810 = vmatpush.msra.mxu0 0.0
    %1811 = vmatpush.msra.mxu0 0.0
    %1812 = vmatpush.msra.mxu0 0.0
    %1813 = vmatpush.msra.mxu0 0.0
    %1814 = vmatpush.msra.mxu0 0.0
    %1815 = vmatpush.msra.mxu0 0.0
    %1816 = vmatpush.msra.mxu0 0.0
    %1817 = vmatpush.msra.mxu0 0.0
    %1818 = vmatpush.msra.mxu0 0.0
    %1819 = vmatpush.msra.mxu0 %v1188
    %1820 = vmatmul.f32.gmra.mxu0 %v1799
    %v1821 = vpop.f32.mrf.mxu0
    %v1822 = vadd.f32 0.0, %v1821
    %1823 = vmatmul.f32.gmra.mxu0 %v1802
    %v1824 = vpop.f32.mrf.mxu0
    %v1825 = vadd.f32 0.0, %v1824
    %1826 = vdwg.mxu0
    %v1827 = vadd.f32 %v1664, %v1822
    %v1828 = vadd.f32 %v1665, %v1825
    %v1829 = vadd.f32 %v1032, %v1827
    %v1830 = vadd.f32 %v1033, %v1828
    %s1831 = scalar_lea.vmem %s8, 1
    %v1832 = vld [vmem:[%s1831] sm:$0x1]
    %v1834 = vperm.slane %v1832, 0
    %v1836 = vadd.f32 %v1829, %v1834
    %v1837 = vadd.f32 %v1830, %v1834
    %s1838 = scalar_lea.vmem %s9, 1
    %v1839 = vld [vmem:[%s1838] sm:$0x1]
    %s1840 = scalar_lea.vmem %s10, 1
    %v1841 = vld [vmem:[%s1840] sm:$0x1]
    %v1842 = vsel %vm72, %v1836, 0.0
    %1843 = vadd.xlane.f32.xlu0 %v1842
    %v1844 = vpop.xlane.xlu0 %1843
    %v1845 = vsel %vm72, %v1837, 0.0
    %1846 = vadd.xlane.f32.xlu0 %v1845
    %v1847 = vpop.xlane.xlu0 %1846
    %v1848 = vmul.f32 %v1844, %v85
    %v1849 = vmul.f32 %v1847, %v85
    %v1850 = vsub.f32 %v1836, %v1848
    %v1851 = vsub.f32 %v1837, %v1849
    %v1852 = vmul.f32 %v1850, %v1850
    %v1853 = vmul.f32 %v1851, %v1851
    %v1854 = vsel %vm72, %v1852, 0.0
    %1855 = vadd.xlane.f32.xlu0 %v1854
    %v1856 = vpop.xlane.xlu0 %1855
    %v1857 = vsel %vm72, %v1853, 0.0
    %1858 = vadd.xlane.f32.xlu0 %v1857
    %v1859 = vpop.xlane.xlu0 %1858
    %v1860 = vmul.f32 %v1856, %v85
    %v1861 = vmul.f32 %v1859, %v85
    %v1862 = vadd.f32 %v1860, 1e-05
    %v1863 = vadd.f32 %v1861, 1e-05
    %v1864 = vrsqrt.pop %v1862
    %v1865 = vmul.f32 %v1864, %v1862
    %v1866 = vmul.f32 %v1865, %v1864
    %v1867 = vmul.f32 0.5, %v1866
    %v1868 = vsub.f32 1.5, %v1867
    %v1869 = vmul.f32 %v1864, %v1868
    %vm1870 = vweird.f32 %v1862
    %vm1871 = vweird.f32 %v1864
    %vm1872 = vmor %vm1870, %vm1871
    %v1873 = vsel %vm1872, %v1864, %v1869
    %v1874 = vrsqrt.pop %v1863
    %v1875 = vmul.f32 %v1874, %v1863
    %v1876 = vmul.f32 %v1875, %v1874
    %v1877 = vmul.f32 0.5, %v1876
    %v1878 = vsub.f32 1.5, %v1877
    %v1879 = vmul.f32 %v1874, %v1878
    %vm1880 = vweird.f32 %v1863
    %vm1881 = vweird.f32 %v1874
    %vm1882 = vmor %vm1880, %vm1881
    %v1883 = vsel %vm1882, %v1874, %v1879
    %v1884 = vmul.f32 %v1850, %v1873
    %v1885 = vmul.f32 %v1851, %v1883
    %v1887 = vperm.slane %v1839, 0
    %v1889 = vmul.f32 %v1887, %v1884
    %v1890 = vmul.f32 %v1887, %v1885
    %v1892 = vperm.slane %v1841, 0
    %v1894 = vadd.f32 %v1889, %v1892
    %v1895 = vadd.f32 %v1890, %v1892
    %s1896 = scalar_lea.vmem %s11, 32
    %v1897 = vld [vmem:[%s1896] sm:$0xff]
    %v1898 = vld [vmem:[%s1896 + $0x8] sm:$0xff]
    %v1899 = vld [vmem:[%s1896 + $0x10] sm:$0xff]
    %v1900 = vld [vmem:[%s1896 + $0x18] sm:$0xff]
    %s1901 = scalar_lea.vmem %s12, 1
    %v1902 = vld [vmem:[%s1901] sm:$0x1]
    %v1904 = vperm.slane %v1902, 0
    %v1907 = vsel %vm72, %v1894, 0
    %v1910 = vsel %vm72, %v1895, 0
    %1912 = vmatpush.msra.mxu0 0.0
    %1913 = vmatpush.msra.mxu0 0.0
    %1914 = vmatpush.msra.mxu0 0.0
    %1915 = vmatpush.msra.mxu0 0.0
    %1916 = vmatpush.msra.mxu0 0.0
    %1917 = vmatpush.msra.mxu0 0.0
    %1918 = vmatpush.msra.mxu0 0.0
    %1919 = vmatpush.msra.mxu0 0.0
    %1920 = vmatpush.msra.mxu0 0.0
    %1921 = vmatpush.msra.mxu0 0.0
    %1922 = vmatpush.msra.mxu0 0.0
    %1923 = vmatpush.msra.mxu0 0.0
    %1924 = vmatpush.msra.mxu0 %v1900
    %1925 = vmatpush.msra.mxu0 %v1899
    %1926 = vmatpush.msra.mxu0 %v1898
    %1927 = vmatpush.msra.mxu0 %v1897
    %1928 = vmatmul.f32.gmra.mxu0 %v1907
    %v1929 = vpop.f32.mrf.mxu0
    %v1930 = vadd.f32 %v1904, %v1929
    %1931 = vmatmul.f32.gmra.mxu0 %v1910
    %v1932 = vpop.f32.mrf.mxu0
    %v1933 = vadd.f32 %v1904, %v1932
    %1934 = vdwg.mxu0
    %v1935 = vmul.f32 %v1930, 0.5
    %v1936 = vmul.f32 %v1933, 0.5
    %v1937 = vmul.f32 %v1930, %v1930
    %v1938 = vmul.f32 %v1933, %v1933
    %v1939 = vmul.f32 %v1937, %v1930
    %v1940 = vmul.f32 %v1938, %v1933
    %v1941 = vmul.f32 %v1939, 0.044715
    %v1942 = vmul.f32 %v1940, 0.044715
    %v1943 = vadd.f32 %v1930, %v1941
    %v1944 = vadd.f32 %v1933, %v1942
    %v1945 = vmul.f32 %v1943, 0.7978846
    %v1946 = vmul.f32 %v1944, 0.7978846
    %v1947 = vtanh.pop %v1945
    %v1948 = vtanh.pop %v1946
    %v1949 = vadd.f32 %v1947, 1.0
    %v1950 = vadd.f32 %v1948, 1.0
    %v1951 = vmul.f32 %v1935, %v1949
    %v1952 = vmul.f32 %v1936, %v1950
    %s1953 = scalar_lea.vmem %s13, 128
    %v1954 = vld [vmem:[%s1953] sm:$0xff]
    %v1955 = vld [vmem:[%s1953 + $0x8] sm:$0xff]
    %v1956 = vld [vmem:[%s1953 + $0x10] sm:$0xff]
    %v1957 = vld [vmem:[%s1953 + $0x18] sm:$0xff]
    %v1958 = vld [vmem:[%s1953 + $0x20] sm:$0xff]
    %v1959 = vld [vmem:[%s1953 + $0x28] sm:$0xff]
    %v1960 = vld [vmem:[%s1953 + $0x30] sm:$0xff]
    %v1961 = vld [vmem:[%s1953 + $0x38] sm:$0xff]
    %v1962 = vld [vmem:[%s1953 + $0x40] sm:$0xff]
    %v1963 = vld [vmem:[%s1953 + $0x48] sm:$0xff]
    %v1964 = vld [vmem:[%s1953 + $0x50] sm:$0xff]
    %v1965 = vld [vmem:[%s1953 + $0x58] sm:$0xff]
    %v1966 = vld [vmem:[%s1953 + $0x60] sm:$0xff]
    %v1967 = vld [vmem:[%s1953 + $0x68] sm:$0xff]
    %v1968 = vld [vmem:[%s1953 + $0x70] sm:$0xff]
    %v1969 = vld [vmem:[%s1953 + $0x78] sm:$0xff]
    %s1970 = scalar_lea.vmem %s14, 1
    %v1971 = vld [vmem:[%s1970] sm:$0x1]
    %v1973 = vperm.slane %v1971, 0
    %1975 = vmatpush.msra.mxu0 %v1969
    %1976 = vmatpush.msra.mxu0 %v1968
    %1977 = vmatpush.msra.mxu0 %v1967
    %1978 = vmatpush.msra.mxu0 %v1966
    %1979 = vmatpush.msra.mxu0 %v1965
    %1980 = vmatpush.msra.mxu0 %v1964
    %1981 = vmatpush.msra.mxu0 %v1963
    %1982 = vmatpush.msra.mxu0 %v1962
    %1983 = vmatpush.msra.mxu0 %v1961
    %1984 = vmatpush.msra.mxu0 %v1960
    %1985 = vmatpush.msra.mxu0 %v1959
    %1986 = vmatpush.msra.mxu0 %v1958
    %1987 = vmatpush.msra.mxu0 %v1957
    %1988 = vmatpush.msra.mxu0 %v1956
    %1989 = vmatpush.msra.mxu0 %v1955
    %1990 = vmatpush.msra.mxu0 %v1954
    %1991 = vmatmul.f32.gmra.mxu0 %v1951
    %v1992 = vpop.f32.mrf.mxu0
    %v1993 = vadd.f32 %v1973, %v1992
    %1994 = vmatmul.f32.gmra.mxu0 %v1952
    %v1995 = vpop.f32.mrf.mxu0
    %v1996 = vadd.f32 %v1973, %v1995
    %1997 = vdwg.mxu0
    %v1998 = vadd.f32 %v1836, %v1993
    %v1999 = vadd.f32 %v1837, %v1996
    %v2000 = vld [vmem:[%s15] sm:$0x1]
    %v2001 = vld [vmem:[%s16] sm:$0x1]
    %v2002 = vsel %vm72, %v1998, 0.0
    %2003 = vadd.xlane.f32.xlu0 %v2002
    %v2004 = vpop.xlane.xlu0 %2003
    %v2005 = vsel %vm72, %v1999, 0.0
    %2006 = vadd.xlane.f32.xlu0 %v2005
    %v2007 = vpop.xlane.xlu0 %2006
    %v2008 = vmul.f32 %v2004, %v85
    %v2009 = vmul.f32 %v2007, %v85
    %v2010 = vsub.f32 %v1998, %v2008
    %v2011 = vsub.f32 %v1999, %v2009
    %v2012 = vmul.f32 %v2010, %v2010
    %v2013 = vmul.f32 %v2011, %v2011
    %v2014 = vsel %vm72, %v2012, 0.0
    %2015 = vadd.xlane.f32.xlu0 %v2014
    %v2016 = vpop.xlane.xlu0 %2015
    %v2017 = vsel %vm72, %v2013, 0.0
    %2018 = vadd.xlane.f32.xlu0 %v2017
    %v2019 = vpop.xlane.xlu0 %2018
    %v2020 = vmul.f32 %v2016, %v85
    %v2021 = vmul.f32 %v2019, %v85
    %v2022 = vadd.f32 %v2020, 1e-05
    %v2023 = vadd.f32 %v2021, 1e-05
    %v2024 = vrsqrt.pop %v2022
    %v2025 = vmul.f32 %v2024, %v2022
    %v2026 = vmul.f32 %v2025, %v2024
    %v2027 = vmul.f32 0.5, %v2026
    %v2028 = vsub.f32 1.5, %v2027
    %v2029 = vmul.f32 %v2024, %v2028
    %vm2030 = vweird.f32 %v2022
    %vm2031 = vweird.f32 %v2024
    %vm2032 = vmor %vm2030, %vm2031
    %v2033 = vsel %vm2032, %v2024, %v2029
    %v2034 = vrsqrt.pop %v2023
    %v2035 = vmul.f32 %v2034, %v2023
    %v2036 = vmul.f32 %v2035, %v2034
    %v2037 = vmul.f32 0.5, %v2036
    %v2038 = vsub.f32 1.5, %v2037
    %v2039 = vmul.f32 %v2034, %v2038
    %vm2040 = vweird.f32 %v2023
    %vm2041 = vweird.f32 %v2034
    %vm2042 = vmor %vm2040, %vm2041
    %v2043 = vsel %vm2042, %v2034, %v2039
    %v2044 = vmul.f32 %v2010, %v2033
    %v2045 = vmul.f32 %v2011, %v2043
    %v2047 = vperm.slane %v2000, 0
    %v2049 = vmul.f32 %v2047, %v2044
    %v2050 = vmul.f32 %v2047, %v2045
    %v2052 = vperm.slane %v2001, 0
    %v2054 = vadd.f32 %v2049, %v2052
    %v2055 = vadd.f32 %v2050, %v2052
    %v2056 = vld [vmem:[%s17] sm:$0xff]
    %v2057 = vld [vmem:[%s17 + $0x8] sm:$0xff]
    %v2058 = vld [vmem:[%s17 + $0x10] sm:$0xff]
    %v2059 = vld [vmem:[%s17 + $0x18] sm:$0xff]
    %v2060 = vld [vmem:[%s17 + $0x20] sm:$0xff]
    %v2061 = vld [vmem:[%s17 + $0x28] sm:$0xff]
    %v2062 = vld [vmem:[%s17 + $0x30] sm:$0xff]
    %v2063 = vld [vmem:[%s17 + $0x38] sm:$0xff]
    %v2065 = vsel %vm72, %v2054, 0
    %v2068 = vsel %vm72, %v2055, 0
    %2070 = vmatpush.msra.mxu0 0.0
    %2071 = vmatpush.msra.mxu0 0.0
    %2072 = vmatpush.msra.mxu0 0.0
    %2073 = vmatpush.msra.mxu0 0.0
    %2074 = vmatpush.msra.mxu0 0.0
    %2075 = vmatpush.msra.mxu0 0.0
    %2076 = vmatpush.msra.mxu0 0.0
    %2077 = vmatpush.msra.mxu0 0.0
    %2078 = vmatpush.msra.mxu0 0.0
    %2079 = vmatpush.msra.mxu0 0.0
    %2080 = vmatpush.msra.mxu0 0.0
    %2081 = vmatpush.msra.mxu0 0.0
    %2082 = vmatpush.msra.mxu0 %v2062
    %2083 = vmatpush.msra.mxu0 %v2060
    %2084 = vmatpush.msra.mxu0 %v2058
    %2085 = vmatpush.msra.mxu0 %v2056
    %2086 = vmatmul.f32.gmra.mxu0 %v2065
    %v2087 = vpop.f32.mrf.mxu0
    %v2088 = vadd.f32 0.0, %v2087
    %2089 = vmatmul.f32.gmra.mxu0 %v2068
    %v2090 = vpop.f32.mrf.mxu0
    %v2091 = vadd.f32 0.0, %v2090
    %2092 = vdwg.mxu0
    %2093 = vmatpush.msra.mxu0 0.0
    %2094 = vmatpush.msra.mxu0 0.0
    %2095 = vmatpush.msra.mxu0 0.0
    %2096 = vmatpush.msra.mxu0 0.0
    %2097 = vmatpush.msra.mxu0 0.0
    %2098 = vmatpush.msra.mxu0 0.0
    %2099 = vmatpush.msra.mxu0 0.0
    %2100 = vmatpush.msra.mxu0 0.0
    %2101 = vmatpush.msra.mxu0 0.0
    %2102 = vmatpush.msra.mxu0 0.0
    %2103 = vmatpush.msra.mxu0 0.0
    %2104 = vmatpush.msra.mxu0 0.0
    %2105 = vmatpush.msra.mxu0 %v2063
    %2106 = vmatpush.msra.mxu0 %v2061
    %2107 = vmatpush.msra.mxu0 %v2059
    %2108 = vmatpush.msra.mxu0 %v2057
    %2109 = vmatmul.f32.gmra.mxu0 %v2065
    %v2110 = vpop.f32.mrf.mxu0
    %v2111 = vadd.f32 0.0, %v2110
    %2112 = vmatmul.f32.gmra.mxu0 %v2068
    %v2113 = vpop.f32.mrf.mxu0
    %v2114 = vadd.f32 0.0, %v2113
    %2115 = vdwg.mxu0
    %2116 = vst [vmem:[#allocation2] sm:$0xff] %v2088
    %2117 = vst [vmem:[#allocation2 + $0x8] sm:$0xff] %v2111
    %2118 = vst [vmem:[#allocation2 + $0x10] sm:$0xff] %v2091
    %2119 = vst [vmem:[#allocation2 + $0x18] sm:$0xff] %v2114
    // Predicated region
    $region74: #{gpt_forward.1} parent=1 // pred_check
      _
    $region75: #{gpt_forward.1} parent=1 // pred_check_branch
      %2121 = sbr.rel (0) target = $region77
    $region76: #{gpt_forward.1} parent=1 // pred_region
      %2123 = vsyncadd [#allocation3], 0
      %s2124 = sshll.u32 [#allocation2], 4
      %s2125 = int_to_ptr.vmem [resolvable:$true] %s2124
      %s2126 = sshll.u32 %s18, 4
      %s2127 = int_to_ptr.hbm [resolvable:$true] %s2126
      %2132 = dma.vmem_to_hbm [thread:$0]  %s2125, 512, %s2127, [#allocation3], 256, 256, 16
    $region77: #{gpt_forward.1} parent=1 // pred_fallthru
      _
    // Predicated region
    $region78: #{gpt_forward.1} parent=1 // pred_check
      _
    $region79: #{gpt_forward.1} parent=1 // pred_check_branch
      %2134 = sbr.rel (0) target = $region81
    $region80: #{gpt_forward.1} parent=1 // pred_region
      %2136 = dma.done [#allocation3], 512
    $region81: #{gpt_forward.1} parent=1 // pred_fallthru
      _
    %2137 = vsyncpa [#allocation3], 1

</llo_original>
